<compile_context>
chip_gen: v5e
topology: v5e:2x2
jax: 0.10.0
libtpu: 0.0.40
codegen_flags: <defaults>
</compile_context>

<pallas_src>
import jax
import jax.numpy as jnp
from jax.experimental import pallas as pl
from jax.experimental.pallas import tpu as pltpu


def _fused_kernel(x_ref, w_ref, s_ref, gamma_ref, beta_ref, o_ref, acc_ref):
    # x_ref     : (tk, HW)        bf16 activation chunk (NCHW order, flat spatial)
    # w_ref     : (1, Cout, tk)   f32 1x1-conv weight chunk
    # s_ref     : (1, 1, tk)      f32 per-channel gate logits chunk (pre-sigmoid)
    # gamma_ref : (Cout, 1)       BN scale
    # beta_ref  : (Cout, 1)       BN shift
    # o_ref     : (Cout, HW)      f32 output
    # acc_ref   : (Cout, HW)      f32 VMEM accumulator (resident across grid)
    k = pl.program_id(0)

    @pl.when(k == 0)
    def _init():
        acc_ref[...] = jnp.zeros_like(acc_ref)

    # Fold the sigmoid gate into the weight chunk (tiny: Cout*tk, not HW*Cin).
    gate = 1.0 / (1.0 + jnp.exp(-s_ref[0]))                       # (1, tk) f32, EUP
    w_bf16 = (w_ref[0] * gate).astype(jnp.bfloat16)               # (Cout, tk) bf16

    # 1x1 conv partial sum on the MXU, native bf16 operands, f32 accumulation.
    acc_ref[...] += jnp.dot(w_bf16, x_ref[...],
                            preferred_element_type=jnp.float32)   # (Cout, HW)

    @pl.when(k == pl.num_programs(0) - 1)
    def _epilogue():
        cout, hw = acc_ref.shape
        inv_n = 1.0 / float(hw)

        # Single fused sweep: sum and sum-of-squares from each 128-lane chunk
        # (each chunk of y is loaded from VMEM once and used for both stats).
        s1 = jnp.zeros((cout, 1), jnp.float32)
        s2 = jnp.zeros((cout, 1), jnp.float32)
        chunk = 128
        for start in range(0, hw, chunk):
            size = min(chunk, hw - start)
            yk = acc_ref[:, start:start + size]                    # (Cout, size)
            s1 = s1 + jnp.sum(yk, axis=1, keepdims=True)
            s2 = s2 + jnp.sum(yk * yk, axis=1, keepdims=True)

        mean = s1 * inv_n                                          # (Cout, 1)
        var = s2 * inv_n - mean * mean                             # biased batch var
        scale = gamma_ref[...] * jax.lax.rsqrt(var + 1e-3)         # (Cout, 1)
        shift = beta_ref[...] - mean * scale                       # (Cout, 1)
        o_ref[...] = acc_ref[...] * scale + shift                  # lane-dense store


def fused_sigmoid_mul_conv1x1_bn(x_nchw, s_nc11, w_oihw, gamma, beta, *, k_splits=3):
    """x_nchw: (N, Cin, H, W); s_nc11: (N, Cin, 1, 1); w_oihw: (Cout, Cin, 1, 1)."""
    N, Cin, H, W = x_nchw.shape
    Cout = w_oihw.shape[0]
    assert N == 1, "kernel written for N=1 (as in the reference module)"
    assert Cin % k_splits == 0
    HW = H * W
    tk = Cin // k_splits

    # Pure reshapes / tiny weight transpose only; the big activation stays in
    # native NCHW memory order and is carried as bf16 (halves HBM traffic).
    x2d = x_nchw.reshape(Cin, HW).astype(jnp.bfloat16)                      # (Cin, HW)
    w3 = w_oihw.reshape(Cout, k_splits, tk).transpose(1, 0, 2).astype(jnp.float32)
    s3 = s_nc11.reshape(k_splits, 1, tk).astype(jnp.float32)                # (k, 1, tk)
    g2 = gamma.reshape(Cout, 1).astype(jnp.float32)
    b2 = beta.reshape(Cout, 1).astype(jnp.float32)

    grid_spec = pltpu.PrefetchScalarGridSpec(
        num_scalar_prefetch=0,
        grid=(k_splits,),
        in_specs=[
            pl.BlockSpec((tk, HW), lambda k: (k, 0)),          # x chunk (pipelined DMA)
            pl.BlockSpec((1, Cout, tk), lambda k: (k, 0, 0)),  # weight chunk
            pl.BlockSpec((1, 1, tk), lambda k: (k, 0, 0)),     # gate-logit chunk
            pl.BlockSpec((Cout, 1), lambda k: (0, 0)),         # gamma (resident)
            pl.BlockSpec((Cout, 1), lambda k: (0, 0)),         # beta  (resident)
        ],
        out_specs=pl.BlockSpec((Cout, HW), lambda k: (0, 0)),  # resident output
        scratch_shapes=[pltpu.VMEM((Cout, HW), jnp.float32)],  # f32 accumulator
    )

    cost = pl.CostEstimate(
        flops=2 * Cout * Cin * HW + 6 * Cout * HW,
        transcendentals=Cin,
        bytes_accessed=2 * Cin * HW + 4 * (Cin + Cout * Cin + 2 * Cout + Cout * HW),
    )

    out2d = pl.pallas_call(
        _fused_kernel,
        out_shape=jax.ShapeDtypeStruct((Cout, HW), jnp.float32),
        grid_spec=grid_spec,
        compiler_params=pltpu.CompilerParams(dimension_semantics=("arbitrary",)),
        cost_estimate=cost,
    )(x2d, w3, s3, g2, b2)

    # (Cout, HW) -> (N, Cout, H, W): pure reshape, no transpose.
    return out2d.reshape(N, Cout, H, W)


if __name__ == "__main__":
    key = jax.random.PRNGKey(0)
    k1, k2, k3 = jax.random.split(key, 3)

    N, Cin, H, W = 1, 432, 28, 28
    Cout = 72

    # Deterministic synthetic inputs / parameters (matching the module's shapes).
    x218 = jax.random.normal(k1, (N, Cin, H, W), dtype=jnp.float32)    # conv-branch input
    x222 = jax.random.normal(k2, (N, Cin, 1, 1), dtype=jnp.float32)    # gate input
    conv_w = jax.random.normal(k3, (Cout, Cin, 1, 1), dtype=jnp.float32) * 0.05
    bn_gamma = jnp.ones((Cout,), dtype=jnp.float32)   # BatchNorm2d default init
    bn_beta = jnp.zeros((Cout,), dtype=jnp.float32)

    out = fused_sigmoid_mul_conv1x1_bn(x218, x222, conv_w, bn_gamma, bn_beta)
    out = jax.block_until_ready(out)

    # Sanity check against a pure-JAX f32 reference of the same math.
    # Tolerance is loosened vs the all-f32 version because the matmul operands
    # are bf16 (accumulation and BN statistics remain f32).
    xs_ref = x218 * jax.nn.sigmoid(x222)
    y_ref = jnp.einsum("nchw,oc->nohw", xs_ref, conv_w.reshape(Cout, Cin))
    mean = jnp.mean(y_ref, axis=(0, 2, 3), keepdims=True)
    var = jnp.var(y_ref, axis=(0, 2, 3), keepdims=True)
    ref = (y_ref - mean) / jnp.sqrt(var + 1e-3) * bn_gamma.reshape(1, Cout, 1, 1) \
          + bn_beta.reshape(1, Cout, 1, 1)

    assert out.shape == (N, Cout, H, W)
    max_err = float(jnp.max(jnp.abs(out - ref)))
    assert max_err < 3e-2, f"mismatch vs reference: {max_err}"

    print("KERNEL_OK")
</pallas_src>

<mosaic_0001>
module attributes {stable_mosaic.version = 11 : i64} {
  func.func @_fused_kernel(%arg0: i32, %arg1: memref<144x784xbf16, #tpu.memory_space<vmem>>, %arg2: memref<1x72x144xf32, #tpu.memory_space<vmem>>, %arg3: memref<1x1x144xf32, #tpu.memory_space<vmem>>, %arg4: memref<72x1xf32, #tpu.memory_space<vmem>>, %arg5: memref<72x1xf32, #tpu.memory_space<vmem>>, %arg6: memref<72x784xf32, #tpu.memory_space<vmem>>, %arg7: memref<72x784xf32, #tpu.memory_space<vmem>>) attributes {dimension_semantics = [#tpu.dimension_semantics<arbitrary>], iteration_bounds = array<i64: 3>, scalar_prefetch = 0 : i64, scratch_operands = 1 : i64, tpu.core_type = #tpu.core_type<tc>, window_params = [{transform_indices = @transform_0, window_bounds = array<i64: 144, 784>}, {transform_indices = @transform_1, window_bounds = array<i64: 1, 72, 144>}, {transform_indices = @transform_2, window_bounds = array<i64: 1, 1, 144>}, {pipeline_mode = #tpu.pipeline_mode<synchronous>, transform_indices = @transform_3, window_bounds = array<i64: 72, 1>}, {pipeline_mode = #tpu.pipeline_mode<synchronous>, transform_indices = @transform_4, window_bounds = array<i64: 72, 1>}, {pipeline_mode = #tpu.pipeline_mode<synchronous>, transform_indices = @transform_5, window_bounds = array<i64: 72, 784>}]} {
    %c0_i32 = arith.constant 0 : i32
    %0 = arith.cmpi eq, %arg0, %c0_i32 : i32
    %1 = arith.extui %0 : i1 to i32
    %c0_i32_0 = arith.constant 0 : i32
    %2 = arith.cmpi ne, %1, %c0_i32_0 : i32
    scf.if %2 {
      %cst_16 = arith.constant 0.000000e+00 : f32
      %25 = vector.broadcast %cst_16 : f32 to vector<72x784xf32>
      %c0_17 = arith.constant 0 : index
      %c0_18 = arith.constant 0 : index
      %26 = vector.load %arg7[%c0_17, %c0_18] : memref<72x784xf32, #tpu.memory_space<vmem>>, vector<72x784xf32>
      tpu.vector_store %arg7[%c0_17, %c0_18], %25 {strides = array<i32>} : memref<72x784xf32, #tpu.memory_space<vmem>>, vector<72x784xf32>,
    } else {
    }
    %c0 = arith.constant 0 : index
    %c0_1 = arith.constant 0 : index
    %c0_2 = arith.constant 0 : index
    %3 = vector.load %arg3[%c0, %c0_1, %c0_2] : memref<1x1x144xf32, #tpu.memory_space<vmem>>, vector<1x1x144xf32>
    %4 = vector.shape_cast %3 : vector<1x1x144xf32> to vector<1x144xf32>
    %cst = arith.constant 0.000000e+00 : f32
    %5 = vector.broadcast %cst : f32 to vector<1x144xf32>
    %6 = arith.subf %5, %4 : vector<1x144xf32>
    %7 = math.exp %6 : vector<1x144xf32>
    %cst_3 = arith.constant 1.000000e+00 : f32
    %8 = vector.broadcast %cst_3 : f32 to vector<1x144xf32>
    %9 = arith.addf %8, %7 : vector<1x144xf32>
    %cst_4 = arith.constant 1.000000e+00 : f32
    %10 = vector.broadcast %cst_4 : f32 to vector<1x144xf32>
    %11 = arith.divf %10, %9 : vector<1x144xf32>
    %c0_5 = arith.constant 0 : index
    %c0_6 = arith.constant 0 : index
    %c0_7 = arith.constant 0 : index
    %12 = vector.load %arg2[%c0_5, %c0_6, %c0_7] : memref<1x72x144xf32, #tpu.memory_space<vmem>>, vector<1x72x144xf32>
    %13 = vector.shape_cast %12 : vector<1x72x144xf32> to vector<72x144xf32>
    %14 = vector.broadcast %11 : vector<1x144xf32> to vector<72x144xf32>
    %15 = arith.mulf %13, %14 : vector<72x144xf32>
    %16 = arith.truncf %15 : vector<72x144xf32> to vector<72x144xbf16>
    %c0_8 = arith.constant 0 : index
    %c0_9 = arith.constant 0 : index
    %17 = vector.load %arg7[%c0_8, %c0_9] : memref<72x784xf32, #tpu.memory_space<vmem>>, vector<72x784xf32>
    %c0_10 = arith.constant 0 : index
    %c0_11 = arith.constant 0 : index
    %18 = vector.load %arg1[%c0_10, %c0_11] : memref<144x784xbf16, #tpu.memory_space<vmem>>, vector<144x784xbf16>
    %cst_12 = arith.constant dense<0.000000e+00> : vector<72x784xf32>
    %19 = tpu.matmul %16, %18, %cst_12 {dimension_numbers = #tpu.dot_dimension_numbers<[1], [0], [0], [1], [0, 0, 1, 1], [], []>} : vector<72x144xbf16>, vector<144x784xbf16>, vector<72x784xf32> -> vector<72x784xf32>
    %20 = arith.addf %17, %19 : vector<72x784xf32>
    %c0_13 = arith.constant 0 : index
    %c0_14 = arith.constant 0 : index
    %21 = vector.load %arg7[%c0_13, %c0_14] : memref<72x784xf32, #tpu.memory_space<vmem>>, vector<72x784xf32>
    tpu.vector_store %arg7[%c0_13, %c0_14], %20 {strides = array<i32>} : memref<72x784xf32, #tpu.memory_space<vmem>>, vector<72x784xf32>,
    %c2_i32 = arith.constant 2 : i32
    %22 = arith.cmpi eq, %arg0, %c2_i32 : i32
    %23 = arith.extui %22 : i1 to i32
    %c0_i32_15 = arith.constant 0 : i32
    %24 = arith.cmpi ne, %23, %c0_i32_15 : i32
    scf.if %24 {
      %cst_16 = arith.constant 0.000000e+00 : f32
      %25 = vector.broadcast %cst_16 : f32 to vector<72x1xf32>
      %cst_17 = arith.constant 0.000000e+00 : f32
      %26 = vector.broadcast %cst_17 : f32 to vector<72x1xf32>
      %c0_18 = arith.constant 0 : index
      %c0_19 = arith.constant 0 : index
      %27 = vector.load %arg7[%c0_18, %c0_19] : memref<72x784xf32, #tpu.memory_space<vmem>>, vector<72x128xf32>
      %cst_20 = arith.constant dense<0.000000e+00> : vector<72xf32>
      %28 = vector.multi_reduction <add>, %27, %cst_20 [1] : vector<72x128xf32> to vector<72xf32>
      %29 = vector.shape_cast %28 : vector<72xf32> to vector<72x1xf32>
      %30 = arith.addf %25, %29 : vector<72x1xf32>
      %31 = arith.mulf %27, %27 : vector<72x128xf32>
      %cst_21 = arith.constant dense<0.000000e+00> : vector<72xf32>
      %32 = vector.multi_reduction <add>, %31, %cst_21 [1] : vector<72x128xf32> to vector<72xf32>
      %33 = vector.shape_cast %32 : vector<72xf32> to vector<72x1xf32>
      %34 = arith.addf %26, %33 : vector<72x1xf32>
      %c0_22 = arith.constant 0 : index
      %c128 = arith.constant 128 : index
      %35 = vector.load %arg7[%c0_22, %c128] : memref<72x784xf32, #tpu.memory_space<vmem>>, vector<72x128xf32>
      %cst_23 = arith.constant dense<0.000000e+00> : vector<72xf32>
      %36 = vector.multi_reduction <add>, %35, %cst_23 [1] : vector<72x128xf32> to vector<72xf32>
      %37 = vector.shape_cast %36 : vector<72xf32> to vector<72x1xf32>
      %38 = arith.addf %30, %37 : vector<72x1xf32>
      %39 = arith.mulf %35, %35 : vector<72x128xf32>
      %cst_24 = arith.constant dense<0.000000e+00> : vector<72xf32>
      %40 = vector.multi_reduction <add>, %39, %cst_24 [1] : vector<72x128xf32> to vector<72xf32>
      %41 = vector.shape_cast %40 : vector<72xf32> to vector<72x1xf32>
      %42 = arith.addf %34, %41 : vector<72x1xf32>
      %c0_25 = arith.constant 0 : index
      %c256 = arith.constant 256 : index
      %43 = vector.load %arg7[%c0_25, %c256] : memref<72x784xf32, #tpu.memory_space<vmem>>, vector<72x128xf32>
      %cst_26 = arith.constant dense<0.000000e+00> : vector<72xf32>
      %44 = vector.multi_reduction <add>, %43, %cst_26 [1] : vector<72x128xf32> to vector<72xf32>
      %45 = vector.shape_cast %44 : vector<72xf32> to vector<72x1xf32>
      %46 = arith.addf %38, %45 : vector<72x1xf32>
      %47 = arith.mulf %43, %43 : vector<72x128xf32>
      %cst_27 = arith.constant dense<0.000000e+00> : vector<72xf32>
      %48 = vector.multi_reduction <add>, %47, %cst_27 [1] : vector<72x128xf32> to vector<72xf32>
      %49 = vector.shape_cast %48 : vector<72xf32> to vector<72x1xf32>
      %50 = arith.addf %42, %49 : vector<72x1xf32>
      %c0_28 = arith.constant 0 : index
      %c384 = arith.constant 384 : index
      %51 = vector.load %arg7[%c0_28, %c384] : memref<72x784xf32, #tpu.memory_space<vmem>>, vector<72x128xf32>
      %cst_29 = arith.constant dense<0.000000e+00> : vector<72xf32>
      %52 = vector.multi_reduction <add>, %51, %cst_29 [1] : vector<72x128xf32> to vector<72xf32>
      %53 = vector.shape_cast %52 : vector<72xf32> to vector<72x1xf32>
      %54 = arith.addf %46, %53 : vector<72x1xf32>
      %55 = arith.mulf %51, %51 : vector<72x128xf32>
      %cst_30 = arith.constant dense<0.000000e+00> : vector<72xf32>
      %56 = vector.multi_reduction <add>, %55, %cst_30 [1] : vector<72x128xf32> to vector<72xf32>
      %57 = vector.shape_cast %56 : vector<72xf32> to vector<72x1xf32>
      %58 = arith.addf %50, %57 : vector<72x1xf32>
      %c0_31 = arith.constant 0 : index
      %c512 = arith.constant 512 : index
      %59 = vector.load %arg7[%c0_31, %c512] : memref<72x784xf32, #tpu.memory_space<vmem>>, vector<72x128xf32>
      %cst_32 = arith.constant dense<0.000000e+00> : vector<72xf32>
      %60 = vector.multi_reduction <add>, %59, %cst_32 [1] : vector<72x128xf32> to vector<72xf32>
      %61 = vector.shape_cast %60 : vector<72xf32> to vector<72x1xf32>
      %62 = arith.addf %54, %61 : vector<72x1xf32>
      %63 = arith.mulf %59, %59 : vector<72x128xf32>
      %cst_33 = arith.constant dense<0.000000e+00> : vector<72xf32>
      %64 = vector.multi_reduction <add>, %63, %cst_33 [1] : vector<72x128xf32> to vector<72xf32>
      %65 = vector.shape_cast %64 : vector<72xf32> to vector<72x1xf32>
      %66 = arith.addf %58, %65 : vector<72x1xf32>
      %c0_34 = arith.constant 0 : index
      %c640 = arith.constant 640 : index
      %67 = vector.load %arg7[%c0_34, %c640] : memref<72x784xf32, #tpu.memory_space<vmem>>, vector<72x128xf32>
      %cst_35 = arith.constant dense<0.000000e+00> : vector<72xf32>
      %68 = vector.multi_reduction <add>, %67, %cst_35 [1] : vector<72x128xf32> to vector<72xf32>
      %69 = vector.shape_cast %68 : vector<72xf32> to vector<72x1xf32>
      %70 = arith.addf %62, %69 : vector<72x1xf32>
      %71 = arith.mulf %67, %67 : vector<72x128xf32>
      %cst_36 = arith.constant dense<0.000000e+00> : vector<72xf32>
      %72 = vector.multi_reduction <add>, %71, %cst_36 [1] : vector<72x128xf32> to vector<72xf32>
      %73 = vector.shape_cast %72 : vector<72xf32> to vector<72x1xf32>
      %74 = arith.addf %66, %73 : vector<72x1xf32>
      %c0_37 = arith.constant 0 : index
      %c768 = arith.constant 768 : index
      %75 = vector.load %arg7[%c0_37, %c768] : memref<72x784xf32, #tpu.memory_space<vmem>>, vector<72x16xf32>
      %cst_38 = arith.constant dense<0.000000e+00> : vector<72xf32>
      %76 = vector.multi_reduction <add>, %75, %cst_38 [1] : vector<72x16xf32> to vector<72xf32>
      %77 = vector.shape_cast %76 : vector<72xf32> to vector<72x1xf32>
      %78 = arith.addf %70, %77 : vector<72x1xf32>
      %79 = arith.mulf %75, %75 : vector<72x16xf32>
      %cst_39 = arith.constant dense<0.000000e+00> : vector<72xf32>
      %80 = vector.multi_reduction <add>, %79, %cst_39 [1] : vector<72x16xf32> to vector<72xf32>
      %81 = vector.shape_cast %80 : vector<72xf32> to vector<72x1xf32>
      %82 = arith.addf %74, %81 : vector<72x1xf32>
      %cst_40 = arith.constant 0.00127551018 : f32
      %83 = vector.broadcast %cst_40 : f32 to vector<72x1xf32>
      %84 = arith.mulf %78, %83 : vector<72x1xf32>
      %cst_41 = arith.constant 0.00127551018 : f32
      %85 = vector.broadcast %cst_41 : f32 to vector<72x1xf32>
      %86 = arith.mulf %82, %85 : vector<72x1xf32>
      %87 = arith.mulf %84, %84 : vector<72x1xf32>
      %88 = arith.subf %86, %87 : vector<72x1xf32>
      %c0_42 = arith.constant 0 : index
      %c0_43 = arith.constant 0 : index
      %89 = vector.load %arg4[%c0_42, %c0_43] : memref<72x1xf32, #tpu.memory_space<vmem>>, vector<72x1xf32>
      %cst_44 = arith.constant 1.000000e-03 : f32
      %90 = vector.broadcast %cst_44 : f32 to vector<72x1xf32>
      %91 = arith.addf %88, %90 : vector<72x1xf32>
      %92 = math.rsqrt %91 : vector<72x1xf32>
      %93 = arith.mulf %89, %92 : vector<72x1xf32>
      %c0_45 = arith.constant 0 : index
      %c0_46 = arith.constant 0 : index
      %94 = vector.load %arg5[%c0_45, %c0_46] : memref<72x1xf32, #tpu.memory_space<vmem>>, vector<72x1xf32>
      %95 = arith.mulf %84, %93 : vector<72x1xf32>
      %96 = arith.subf %94, %95 : vector<72x1xf32>
      %c0_47 = arith.constant 0 : index
      %c0_48 = arith.constant 0 : index
      %97 = vector.load %arg7[%c0_47, %c0_48] : memref<72x784xf32, #tpu.memory_space<vmem>>, vector<72x784xf32>
      %98 = vector.broadcast %93 : vector<72x1xf32> to vector<72x784xf32>
      %99 = arith.mulf %97, %98 : vector<72x784xf32>
      %100 = vector.broadcast %96 : vector<72x1xf32> to vector<72x784xf32>
      %101 = arith.addf %99, %100 : vector<72x784xf32>
      %c0_49 = arith.constant 0 : index
      %c0_50 = arith.constant 0 : index
      %102 = vector.load %arg6[%c0_49, %c0_50] : memref<72x784xf32, #tpu.memory_space<vmem>>, vector<72x784xf32>
      tpu.vector_store %arg6[%c0_49, %c0_50], %101 {strides = array<i32>} : memref<72x784xf32, #tpu.memory_space<vmem>>, vector<72x784xf32>,
    } else {
    }
    return
  }
  func.func @transform_0(%arg0: i32) -> (i32, i32) {
    %c0_i32 = arith.constant 0 : i32
    %c0_i32_0 = arith.constant 0 : i32
    return %arg0, %c0_i32 : i32, i32
  }
  func.func @transform_1(%arg0: i32) -> (i32, i32, i32) {
    %c0_i32 = arith.constant 0 : i32
    %c0_i32_0 = arith.constant 0 : i32
    %c0_i32_1 = arith.constant 0 : i32
    return %arg0, %c0_i32, %c0_i32_0 : i32, i32, i32
  }
  func.func @transform_2(%arg0: i32) -> (i32, i32, i32) {
    %c0_i32 = arith.constant 0 : i32
    %c0_i32_0 = arith.constant 0 : i32
    %c0_i32_1 = arith.constant 0 : i32
    return %arg0, %c0_i32, %c0_i32_0 : i32, i32, i32
  }
  func.func @transform_3(%arg0: i32) -> (i32, i32) {
    %c0_i32 = arith.constant 0 : i32
    %c0_i32_0 = arith.constant 0 : i32
    %c0_i32_1 = arith.constant 0 : i32
    return %c0_i32, %c0_i32_0 : i32, i32
  }
  func.func @transform_4(%arg0: i32) -> (i32, i32) {
    %c0_i32 = arith.constant 0 : i32
    %c0_i32_0 = arith.constant 0 : i32
    %c0_i32_1 = arith.constant 0 : i32
    return %c0_i32, %c0_i32_0 : i32, i32
  }
  func.func @transform_5(%arg0: i32) -> (i32, i32) {
    %c0_i32 = arith.constant 0 : i32
    %c0_i32_0 = arith.constant 0 : i32
    %c0_i32_1 = arith.constant 0 : i32
    return %c0_i32, %c0_i32_0 : i32, i32
  }
}

</mosaic_0001>

<llo_original>
// kernel: tpu_custom_call.1
$region0: #{tpu_custom_call.1}
  #allocation0 [shape = 'u32[]', space=smem, size = 0x4, offset = 0x4, fixed_abs, tag = 'smem constant byte address 0x4 - core index']
  #allocation1 [shape = 'u32[72,128]{1,0:T(1,128)}', space=vmem, size = 0x9000, scoped, tag = 'internal scratch']
  #allocation2 [shape = 'f32[72,784]{1,0:T(8,128)}', space=vmem, size = 0x3f000, scoped, tag = 'scratch operand']
  %s0 = inlined_call_operand.hbm [shape: bf16[432,784], index: 0, kind: input, shape index: {}]
  %s1 = inlined_call_operand.hbm [shape: f32[3,72,144], index: 1, kind: input, shape index: {}]
  %s2 = inlined_call_operand.vmem [shape: f32[3,1,144], index: 2, kind: input, shape index: {}]
  %s3 = inlined_call_operand.vmem [shape: f32[72,1], index: 3, kind: input, shape index: {}]
  %s4 = inlined_call_operand.vmem [shape: f32[72,1], index: 4, kind: input, shape index: {}]
  %s5 = inlined_call_operand.hbm [shape: f32[72,784], index: 5, kind: output, shape index: {}]
  %s6 = sld [smem:[#allocation0]]
  $region69: #{tpu_custom_call.1} parent=0
    _
  %s8 = ssub.s32 1, %s6
  %s9 = scalar_select 0, %s8, %s6
  $region1: #{tpu_custom_call.1} parent=0
    #allocation3 [shape = 'u8[516096]{0}', space=vmem, size = 0x7e000, scoped, tag = 'input window, operand 0']
    #allocation4 [shape = 's32[2]{0}', space=sflag, size = 0x8, scoped, tag = 'scoped memory for tpu_custom_call.1']
    #allocation5 [shape = 's32[2]{0}', space=sflag, size = 0x8, scoped, tag = 'scoped memory for tpu_custom_call.1']
    #allocation6 [shape = 'u8[147456]{0}', space=vmem, size = 0x24000, scoped, tag = 'input window, operand 1']
    #allocation7 [shape = 's32[2]{0}', space=sflag, size = 0x8, scoped, tag = 'scoped memory for tpu_custom_call.1']
    #allocation8 [shape = 'u8[258048]{0}', space=vmem, size = 0x3f000, scoped, tag = 'output window, operand 0, single buffered']
    %10 = vsyncpa [#allocation4], 0
    %s11 = scalar_lea.sflag [#allocation4], 1
    %12 = vsyncpa %s11, 0
    %13 = vsyncpa [#allocation7], 0
    %s14 = scalar_lea.sflag [#allocation7], 1
    %15 = vsyncpa %s14, 0
    %16 = vsyncpa [#allocation5], 0
    loop: start=0, step=1, limit=5
    $region2: #{tpu_custom_call.1} parent=1 // loop_pre_header
      _
    $region3: #{tpu_custom_call.1} parent=1 // loop_header
      %s18 = sphi 0, %s22
      %p19 = scmp.ge.s32.totalorder %s18, 5
      %s28 = sphi 0, %s30
      %s31 = sphi 0, %s28
      %s32 = sphi 0, %s31
      %s48 = sphi 0, %s32
      %s54 = sphi 0, %s56
      %s57 = sphi 0, %s54
      %s58 = sphi 0, %s57
      %s74 = sphi 0, %s58
      %s80 = sphi 0, %s82
      %s83 = sphi 0, %s80
      %s84 = sphi 0, %s83
      %s100 = sphi 0, %s84
      %s104 = sphi 0, %s104
      %s106 = sphi 0, %s104
      %s107 = sphi 0, %s106
      %s121 = sphi 0, %s107
      %s125 = sphi 0, %s125
      %s127 = sphi 0, %s125
      %s128 = sphi 0, %s127
      %s142 = sphi 0, %s128
      %s146 = sphi 0, %s146
      %s148 = sphi 0, %s146
      %s149 = sphi 0, %s148
      %s163 = sphi 0, %s149
    $region4: #{tpu_custom_call.1} parent=1 // loop_header_branch
      %21 = sbr.rel (%p19) target = $region8
    $region5: #{tpu_custom_call.1} parent=1 // loop_body
      %s23 = ssub.s32 %s18, 1
      %s24 = ssub.s32 %s18, 2
      %s25 = sadd.s32 %s18, 1
      %s26 = ssub.s32 %s18, %s25
      %p27 = scmp.eq.s32.totalorder %s26, 0
      %s29 = sadd.s32 %s28, 1
      %s30 = scalar_select %p27, %s28, %s29
      %p33 = pneg %p27
      %p34 = scmp.eq.s32.totalorder %s18, 2
      %p35 = por %p33, %p34
      %p36 = scmp.ne.s32.totalorder %s28, %s31
      %p37 = scmp.eq.s32.totalorder %s18, 0
      %p38 = por %p36, %p37
      %p39 = scmp.ne.s32.totalorder %s28, %s31
      %p40 = scmp.eq.s32.totalorder %s23, 2
      %p41 = por %p39, %p40
      %p42 = scmp.ne.s32.totalorder %s31, %s32
      %p43 = scmp.eq.s32.totalorder %s23, 0
      %p44 = por %p42, %p43
      %p45 = scmp.ne.s32.totalorder %s31, %s32
      %p46 = scmp.eq.s32.totalorder %s24, 2
      %p47 = por %p45, %p46
      %p49 = scmp.ne.s32.totalorder %s32, %s48
      %p50 = scmp.eq.s32.totalorder %s24, 0
      %p51 = por %p49, %p50
      %s52 = ssub.s32 %s18, %s25
      %p53 = scmp.eq.s32.totalorder %s52, 0
      %s55 = sadd.s32 %s54, 1
      %s56 = scalar_select %p53, %s54, %s55
      %p59 = pneg %p53
      %p60 = scmp.eq.s32.totalorder %s18, 2
      %p61 = por %p59, %p60
      %p62 = scmp.ne.s32.totalorder %s54, %s57
      %p63 = scmp.eq.s32.totalorder %s18, 0
      %p64 = por %p62, %p63
      %p65 = scmp.ne.s32.totalorder %s54, %s57
      %p66 = scmp.eq.s32.totalorder %s23, 2
      %p67 = por %p65, %p66
      %p68 = scmp.ne.s32.totalorder %s57, %s58
      %p69 = scmp.eq.s32.totalorder %s23, 0
      %p70 = por %p68, %p69
      %p71 = scmp.ne.s32.totalorder %s57, %s58
      %p72 = scmp.eq.s32.totalorder %s24, 2
      %p73 = por %p71, %p72
      %p75 = scmp.ne.s32.totalorder %s58, %s74
      %p76 = scmp.eq.s32.totalorder %s24, 0
      %p77 = por %p75, %p76
      %s78 = ssub.s32 %s18, %s25
      %p79 = scmp.eq.s32.totalorder %s78, 0
      %s81 = sadd.s32 %s80, 1
      %s82 = scalar_select %p79, %s80, %s81
      %p85 = pneg %p79
      %p86 = scmp.eq.s32.totalorder %s18, 2
      %p87 = por %p85, %p86
      %p88 = scmp.ne.s32.totalorder %s80, %s83
      %p89 = scmp.eq.s32.totalorder %s18, 0
      %p90 = por %p88, %p89
      %p91 = scmp.ne.s32.totalorder %s80, %s83
      %p92 = scmp.eq.s32.totalorder %s23, 2
      %p93 = por %p91, %p92
      %p94 = scmp.ne.s32.totalorder %s83, %s84
      %p95 = scmp.eq.s32.totalorder %s23, 0
      %p96 = por %p94, %p95
      %p97 = scmp.ne.s32.totalorder %s83, %s84
      %p98 = scmp.eq.s32.totalorder %s24, 2
      %p99 = por %p97, %p98
      %p101 = scmp.ne.s32.totalorder %s84, %s100
      %p102 = scmp.eq.s32.totalorder %s24, 0
      %p103 = por %p101, %p102
      %s105 = sadd.s32 %s104, 1
      %p108 = scmp.eq.s32.totalorder %s18, 2
      %p109 = scmp.ne.s32.totalorder %s104, %s106
      %p110 = scmp.eq.s32.totalorder %s18, 0
      %p111 = por %p109, %p110
      %p112 = scmp.ne.s32.totalorder %s104, %s106
      %p113 = scmp.eq.s32.totalorder %s23, 2
      %p114 = por %p112, %p113
      %p115 = scmp.ne.s32.totalorder %s106, %s107
      %p116 = scmp.eq.s32.totalorder %s23, 0
      %p117 = por %p115, %p116
      %p118 = scmp.ne.s32.totalorder %s106, %s107
      %p119 = scmp.eq.s32.totalorder %s24, 2
      %p120 = por %p118, %p119
      %p122 = scmp.ne.s32.totalorder %s107, %s121
      %p123 = scmp.eq.s32.totalorder %s24, 0
      %p124 = por %p122, %p123
      %s126 = sadd.s32 %s125, 1
      %p129 = scmp.eq.s32.totalorder %s18, 2
      %p130 = scmp.ne.s32.totalorder %s125, %s127
      %p131 = scmp.eq.s32.totalorder %s18, 0
      %p132 = por %p130, %p131
      %p133 = scmp.ne.s32.totalorder %s125, %s127
      %p134 = scmp.eq.s32.totalorder %s23, 2
      %p135 = por %p133, %p134
      %p136 = scmp.ne.s32.totalorder %s127, %s128
      %p137 = scmp.eq.s32.totalorder %s23, 0
      %p138 = por %p136, %p137
      %p139 = scmp.ne.s32.totalorder %s127, %s128
      %p140 = scmp.eq.s32.totalorder %s24, 2
      %p141 = por %p139, %p140
      %p143 = scmp.ne.s32.totalorder %s128, %s142
      %p144 = scmp.eq.s32.totalorder %s24, 0
      %p145 = por %p143, %p144
      %s147 = sadd.s32 %s146, 1
      %p150 = scmp.eq.s32.totalorder %s18, 2
      %p151 = scmp.ne.s32.totalorder %s146, %s148
      %p152 = scmp.eq.s32.totalorder %s18, 0
      %p153 = por %p151, %p152
      %p154 = scmp.ne.s32.totalorder %s146, %s148
      %p155 = scmp.eq.s32.totalorder %s23, 2
      %p156 = por %p154, %p155
      %p157 = scmp.ne.s32.totalorder %s148, %s149
      %p158 = scmp.eq.s32.totalorder %s23, 0
      %p159 = por %p157, %p158
      %p160 = scmp.ne.s32.totalorder %s148, %s149
      %p161 = scmp.eq.s32.totalorder %s24, 2
      %p162 = por %p160, %p161
      %p164 = scmp.ne.s32.totalorder %s149, %s163
      %p165 = scmp.eq.s32.totalorder %s24, 0
      %p166 = por %p164, %p165
      %p167 = scmp.le.s32.totalorder 1, %s18
      %p168 = scmp.lt.s32.totalorder %s18, 4
      %p169 = pnand %p167, %p168
      %p170 = pneg %p169
      // Predicated region
      $region9: #{tpu_custom_call.1} parent=5 // pred_check
        _
      $region10: #{tpu_custom_call.1} parent=5 // pred_check_branch
        %172 = sbr.rel (%p169) target = $region12
      $region11: #{tpu_custom_call.1} parent=5 // pred_region
        %s173 = ssub.s32 %s18, 1
        // Predicated region
        $region13: #{tpu_custom_call.1} parent=11 // pred_check
          %p174 = pneg %p117
        $region14: #{tpu_custom_call.1} parent=11 // pred_check_branch
          %176 = sbr.rel (%p174) target = $region16
        $region15: #{tpu_custom_call.1} parent=11 // pred_region
          _
        $region16: #{tpu_custom_call.1} parent=11 // pred_fallthru
          _
        // Predicated region
        $region17: #{tpu_custom_call.1} parent=11 // pred_check
          %p177 = pneg %p138
        $region18: #{tpu_custom_call.1} parent=11 // pred_check_branch
          %179 = sbr.rel (%p177) target = $region20
        $region19: #{tpu_custom_call.1} parent=11 // pred_region
          _
        $region20: #{tpu_custom_call.1} parent=11 // pred_fallthru
          _
      $region12: #{tpu_custom_call.1} parent=5 // pred_fallthru
        _
      %p180 = scmp.lt.s32.totalorder %s18, 3
      // Predicated region
      $region21: #{tpu_custom_call.1} parent=5 // pred_check
        %p181 = pneg %p180
      $region22: #{tpu_custom_call.1} parent=5 // pred_check_branch
        %183 = sbr.rel (%p181) target = $region24
      $region23: #{tpu_custom_call.1} parent=5 // pred_region
        // Predicated region
        $region25: #{tpu_custom_call.1} parent=23 // pred_check
          %p184 = pneg %p38
        $region26: #{tpu_custom_call.1} parent=23 // pred_check_branch
          %186 = sbr.rel (%p184) target = $region28
        $region27: #{tpu_custom_call.1} parent=23 // pred_region
          %s187 = sand.u32 %s28, 1
          %s188 = scalar_lea.sflag [#allocation4], %s187
          %s189 = sand.u32 %s28, 1
          %s190 = smul.addr %s189, 504
          %s191 = scalar_lea.vmem [#allocation3], %s190
          %s192 = smul.u32 18, %s18
          %194 = vsyncadd %s188, 0
          %s195 = smul.addr %s192, 7
          %s196 = smul.addr %s195, 4
          %s197 = scalar_lea.hbm %s0, %s196
          %s198 = sshll.u32 %s197, 4
          %s199 = int_to_ptr.hbm [resolvable:$true] %s198
          %s200 = sshll.u32 %s191, 4
          %s201 = int_to_ptr.vmem [resolvable:$true] %s200
          %206 = dma.hbm_to_vmem [thread:$0]  %s199, 8064, %s201, %s188, 448, 448, 28
        $region28: #{tpu_custom_call.1} parent=23 // pred_fallthru
          _
        // Predicated region
        $region29: #{tpu_custom_call.1} parent=23 // pred_check
          %p207 = pneg %p64
        $region30: #{tpu_custom_call.1} parent=23 // pred_check_branch
          %209 = sbr.rel (%p207) target = $region32
        $region31: #{tpu_custom_call.1} parent=23 // pred_region
          %s210 = sand.u32 %s54, 1
          %s211 = scalar_lea.sflag [#allocation7], %s210
          %s212 = sand.u32 %s54, 1
          %s213 = smul.addr %s212, 144
          %s214 = scalar_lea.vmem [#allocation6], %s213
          %216 = vsyncadd %s211, 0
          %s217 = smul.addr %s18, 18
          %s218 = smul.addr %s217, 8
          %s219 = scalar_lea.hbm %s1, %s218
          %s220 = sshll.u32 %s219, 4
          %s221 = int_to_ptr.hbm [resolvable:$true] %s220
          %s222 = sshll.u32 %s214, 4
          %s223 = int_to_ptr.vmem [resolvable:$true] %s222
          %228 = dma.hbm_to_vmem [thread:$0]  %s221, 2304, %s223, %s211, 256, 256, 16
        $region32: #{tpu_custom_call.1} parent=23 // pred_fallthru
          _
        // Predicated region
        $region33: #{tpu_custom_call.1} parent=23 // pred_check
          %p229 = pneg %p90
        $region34: #{tpu_custom_call.1} parent=23 // pred_check_branch
          %231 = sbr.rel (%p229) target = $region36
        $region35: #{tpu_custom_call.1} parent=23 // pred_region
          %p232 = scmp.lt.s32.totalorder %s18, 2
          %s233 = scalar_select %p232, %s18, 2
          %s234 = smul.addr %s233, 2
          %s235 = scalar_lea.vmem %s2, %s234
        $region36: #{tpu_custom_call.1} parent=23 // pred_fallthru
          _
      $region24: #{tpu_custom_call.1} parent=5 // pred_fallthru
        _
      %p236 = scmp.le.s32.totalorder 1, %s18
      %p237 = scmp.lt.s32.totalorder %s18, 4
      %p238 = pnand %p236, %p237
      %p239 = pneg %p238
      // Predicated region
      $region37: #{tpu_custom_call.1} parent=5 // pred_check
        _
      $region38: #{tpu_custom_call.1} parent=5 // pred_check_branch
        %241 = sbr.rel (%p238) target = $region40
      $region39: #{tpu_custom_call.1} parent=5 // pred_region
        %s242 = ssub.s32 %s18, 1
        %s243 = sand.u32 %s31, 1
        %s244 = scalar_lea.sflag [#allocation4], %s243
        %s245 = sand.u32 %s31, 1
        %s246 = smul.addr %s245, 504
        %s247 = scalar_lea.vmem [#allocation3], %s246
        // Predicated region
        $region41: #{tpu_custom_call.1} parent=39 // pred_check
          %p248 = pneg %p44
        $region42: #{tpu_custom_call.1} parent=39 // pred_check_branch
          %250 = sbr.rel (%p248) target = $region44
        $region43: #{tpu_custom_call.1} parent=39 // pred_region
          %252 = dma.done %s244, 8064
        $region44: #{tpu_custom_call.1} parent=39 // pred_fallthru
          _
        %s253 = sand.u32 %s57, 1
        %s254 = scalar_lea.sflag [#allocation7], %s253
        %s255 = sand.u32 %s57, 1
        %s256 = smul.addr %s255, 144
        %s257 = scalar_lea.vmem [#allocation6], %s256
        // Predicated region
        $region45: #{tpu_custom_call.1} parent=39 // pred_check
          %p258 = pneg %p70
        $region46: #{tpu_custom_call.1} parent=39 // pred_check_branch
          %260 = sbr.rel (%p258) target = $region48
        $region47: #{tpu_custom_call.1} parent=39 // pred_region
          %262 = dma.done %s254, 2304
        $region48: #{tpu_custom_call.1} parent=39 // pred_fallthru
          _
        %s263 = sand.u32 %s31, 1
        %s264 = scalar_lea.sflag [#allocation4], %s263
        %s265 = sand.u32 %s31, 1
        %s266 = smul.addr %s265, 504
        %s267 = scalar_lea.vmem [#allocation3], %s266
        %p268 = pneg %p44
        %p269 = pneg %p41
        %s270 = sand.u32 %s57, 1
        %s271 = scalar_lea.sflag [#allocation7], %s270
        %s272 = sand.u32 %s57, 1
        %s273 = smul.addr %s272, 144
        %s274 = scalar_lea.vmem [#allocation6], %s273
        %p275 = pneg %p70
        %p276 = pneg %p67
        %p277 = scmp.lt.s32.totalorder %s23, 2
        %s278 = scalar_select %p277, %s23, 2
        %s279 = smul.addr %s278, 2
        %s280 = scalar_lea.vmem %s2, %s279
        %p281 = pneg %p96
        %p282 = pneg %p93
        %p283 = pneg %p117
        %p284 = pneg %p114
        %p285 = pneg %p138
        %p286 = pneg %p135
        %p287 = pneg %p159
        %p288 = pneg %p156
        %s289 = smul.u32 18, %s23
        %p290 = scmp.lt.s32.totalorder %s23, 2
        %s291 = scalar_select %p290, %s23, 2
        %s292 = smul.addr %s291, 2
        %s293 = scalar_lea.vmem %s2, %s292
        %p295 = scmp.eq.s32.totalorder %s23, 0
        // Predicated region
        $region49: #{tpu_custom_call.1} parent=39 // pred_check
          %p296 = pneg %p295
        $region50: #{tpu_custom_call.1} parent=39 // pred_check_branch
          %298 = sbr.rel (%p296) target = $region52
        $region51: #{tpu_custom_call.1} parent=39 // pred_region
          %299 = vst [vmem:[#allocation2] sm:$0xff] 0.0
          %300 = vst [vmem:[#allocation2 + $0x8] sm:$0xff] 0.0
          %301 = vst [vmem:[#allocation2 + $0x10] sm:$0xff] 0.0
          %302 = vst [vmem:[#allocation2 + $0x18] sm:$0xff] 0.0
          %303 = vst [vmem:[#allocation2 + $0x20] sm:$0xff] 0.0
          %304 = vst [vmem:[#allocation2 + $0x28] sm:$0xff] 0.0
          %vm305 = vcmask 130048
          %306 = vst.msk [vmem:[#allocation2 + $0x30] sm:$0xff] %vm305, 0.0
          %307 = vst [vmem:[#allocation2 + $0x38] sm:$0xff] 0.0
          %308 = vst [vmem:[#allocation2 + $0x40] sm:$0xff] 0.0
          %309 = vst [vmem:[#allocation2 + $0x48] sm:$0xff] 0.0
          %310 = vst [vmem:[#allocation2 + $0x50] sm:$0xff] 0.0
          %311 = vst [vmem:[#allocation2 + $0x58] sm:$0xff] 0.0
          %312 = vst [vmem:[#allocation2 + $0x60] sm:$0xff] 0.0
          %313 = vst.msk [vmem:[#allocation2 + $0x68] sm:$0xff] %vm305, 0.0
          %314 = vst [vmem:[#allocation2 + $0x70] sm:$0xff] 0.0
          %315 = vst [vmem:[#allocation2 + $0x78] sm:$0xff] 0.0
          %316 = vst [vmem:[#allocation2 + $0x80] sm:$0xff] 0.0
          %317 = vst [vmem:[#allocation2 + $0x88] sm:$0xff] 0.0
          %318 = vst [vmem:[#allocation2 + $0x90] sm:$0xff] 0.0
          %319 = vst [vmem:[#allocation2 + $0x98] sm:$0xff] 0.0
          %320 = vst.msk [vmem:[#allocation2 + $0xa0] sm:$0xff] %vm305, 0.0
          %321 = vst [vmem:[#allocation2 + $0xa8] sm:$0xff] 0.0
          %322 = vst [vmem:[#allocation2 + $0xb0] sm:$0xff] 0.0
          %323 = vst [vmem:[#allocation2 + $0xb8] sm:$0xff] 0.0
          %324 = vst [vmem:[#allocation2 + $0xc0] sm:$0xff] 0.0
          %325 = vst [vmem:[#allocation2 + $0xc8] sm:$0xff] 0.0
          %326 = vst [vmem:[#allocation2 + $0xd0] sm:$0xff] 0.0
          %327 = vst.msk [vmem:[#allocation2 + $0xd8] sm:$0xff] %vm305, 0.0
          %328 = vst [vmem:[#allocation2 + $0xe0] sm:$0xff] 0.0
          %329 = vst [vmem:[#allocation2 + $0xe8] sm:$0xff] 0.0
          %330 = vst [vmem:[#allocation2 + $0xf0] sm:$0xff] 0.0
          %331 = vst [vmem:[#allocation2 + $0xf8] sm:$0xff] 0.0
          %332 = vst [vmem:[#allocation2 + $0x100] sm:$0xff] 0.0
          %333 = vst [vmem:[#allocation2 + $0x108] sm:$0xff] 0.0
          %334 = vst.msk [vmem:[#allocation2 + $0x110] sm:$0xff] %vm305, 0.0
          %335 = vst [vmem:[#allocation2 + $0x118] sm:$0xff] 0.0
          %336 = vst [vmem:[#allocation2 + $0x120] sm:$0xff] 0.0
          %337 = vst [vmem:[#allocation2 + $0x128] sm:$0xff] 0.0
          %338 = vst [vmem:[#allocation2 + $0x130] sm:$0xff] 0.0
          %339 = vst [vmem:[#allocation2 + $0x138] sm:$0xff] 0.0
          %340 = vst [vmem:[#allocation2 + $0x140] sm:$0xff] 0.0
          %341 = vst.msk [vmem:[#allocation2 + $0x148] sm:$0xff] %vm305, 0.0
          %342 = vst [vmem:[#allocation2 + $0x150] sm:$0xff] 0.0
          %343 = vst [vmem:[#allocation2 + $0x158] sm:$0xff] 0.0
          %344 = vst [vmem:[#allocation2 + $0x160] sm:$0xff] 0.0
          %345 = vst [vmem:[#allocation2 + $0x168] sm:$0xff] 0.0
          %346 = vst [vmem:[#allocation2 + $0x170] sm:$0xff] 0.0
          %347 = vst [vmem:[#allocation2 + $0x178] sm:$0xff] 0.0
          %348 = vst.msk [vmem:[#allocation2 + $0x180] sm:$0xff] %vm305, 0.0
          %349 = vst [vmem:[#allocation2 + $0x188] sm:$0xff] 0.0
          %350 = vst [vmem:[#allocation2 + $0x190] sm:$0xff] 0.0
          %351 = vst [vmem:[#allocation2 + $0x198] sm:$0xff] 0.0
          %352 = vst [vmem:[#allocation2 + $0x1a0] sm:$0xff] 0.0
          %353 = vst [vmem:[#allocation2 + $0x1a8] sm:$0xff] 0.0
          %354 = vst [vmem:[#allocation2 + $0x1b0] sm:$0xff] 0.0
          %355 = vst.msk [vmem:[#allocation2 + $0x1b8] sm:$0xff] %vm305, 0.0
          %356 = vst [vmem:[#allocation2 + $0x1c0] sm:$0xff] 0.0
          %357 = vst [vmem:[#allocation2 + $0x1c8] sm:$0xff] 0.0
          %358 = vst [vmem:[#allocation2 + $0x1d0] sm:$0xff] 0.0
          %359 = vst [vmem:[#allocation2 + $0x1d8] sm:$0xff] 0.0
          %360 = vst [vmem:[#allocation2 + $0x1e0] sm:$0xff] 0.0
          %361 = vst [vmem:[#allocation2 + $0x1e8] sm:$0xff] 0.0
          %362 = vst.msk [vmem:[#allocation2 + $0x1f0] sm:$0xff] %vm305, 0.0
        $region52: #{tpu_custom_call.1} parent=39 // pred_fallthru
          _
        %v363 = vld [vmem:[%s293] sm:$0x3]
        %v364 = vsub.f32 0.0, %v363
        %v365 = vmul.f32 %v364, 1.442695
        %v366 = vpow.pop %v365
        %v367 = vadd.f32 %v366, 1.0
        %v368 = vrcp.pop %v367
        %v369 = vmul.f32 %v367, %v368
        %v370 = vsub.f32 1.0, %v369
        %v371 = vmul.f32 %v368, %v370
        %v372 = vadd.f32 %v368, %v371
        %vm373 = vweird.f32 %v367
        %vm374 = vweird.f32 %v368
        %vm375 = vmor %vm373, %vm374
        %v376 = vsel %vm375, %v368, %v372
        %v377 = vand.u32 2147483647, %v367
        %vm378 = vcmp.eq.f32.partialorder %v377, 8.507059e+37
        %v379 = vand.u32 %v367, 2147483648
        %v380 = vor.u32 1.1754944e-38, %v379
        %v381 = vsel %vm378, %v380, %v376
        %v382 = vmul.f32 1.0, %v381
        %v383 = vld [vmem:[%s257] sm:$0xff]
        %v384 = vld [vmem:[%s257 + $0x8] sm:$0xff]
        %v385 = vld [vmem:[%s257 + $0x10] sm:$0xff]
        %v386 = vld [vmem:[%s257 + $0x18] sm:$0xff]
        %v387 = vld [vmem:[%s257 + $0x20] sm:$0xff]
        %v388 = vld [vmem:[%s257 + $0x28] sm:$0xff]
        %v389 = vld [vmem:[%s257 + $0x30] sm:$0xff]
        %v390 = vld [vmem:[%s257 + $0x38] sm:$0xff]
        %v391 = vld [vmem:[%s257 + $0x40] sm:$0xff]
        %v392 = vld [vmem:[%s257 + $0x48] sm:$0xff]
        %v393 = vld [vmem:[%s257 + $0x50] sm:$0xff]
        %v394 = vld [vmem:[%s257 + $0x58] sm:$0xff]
        %v395 = vld [vmem:[%s257 + $0x60] sm:$0xff]
        %v396 = vld [vmem:[%s257 + $0x68] sm:$0xff]
        %v397 = vld [vmem:[%s257 + $0x70] sm:$0xff]
        %v398 = vld [vmem:[%s257 + $0x78] sm:$0xff]
        %v399 = vld [vmem:[%s257 + $0x80] sm:$0xff]
        %v400 = vld [vmem:[%s257 + $0x88] sm:$0xff]
        %v402 = vperm.slane %v382, 0
        %v403 = vperm.slane %v382, 1
        %v406 = vmul.f32 %v383, %v402
        %v407 = vmul.f32 %v384, %v403
        %v408 = vmul.f32 %v385, %v402
        %v409 = vmul.f32 %v386, %v403
        %v410 = vmul.f32 %v387, %v402
        %v411 = vmul.f32 %v388, %v403
        %v412 = vmul.f32 %v389, %v402
        %v413 = vmul.f32 %v390, %v403
        %v414 = vmul.f32 %v391, %v402
        %v415 = vmul.f32 %v392, %v403
        %v416 = vmul.f32 %v393, %v402
        %v417 = vmul.f32 %v394, %v403
        %v418 = vmul.f32 %v395, %v402
        %v419 = vmul.f32 %v396, %v403
        %v420 = vmul.f32 %v397, %v402
        %v421 = vmul.f32 %v398, %v403
        %v422 = vmul.f32 %v399, %v402
        %v423 = vmul.f32 %v400, %v403
        %v424 = vpack.c.bf16 %v408, %v406
        %v425 = vpack.c.bf16 %v409, %v407
        %v426 = vpack.c.bf16 %v412, %v410
        %v427 = vpack.c.bf16 %v413, %v411
        %v428 = vpack.c.bf16 %v416, %v414
        %v429 = vpack.c.bf16 %v417, %v415
        %v430 = vpack.c.bf16 %v420, %v418
        %v431 = vpack.c.bf16 %v421, %v419
        %v432 = vpack.c.bf16 %v422, %v422
        %v433 = vpack.c.bf16 %v423, %v423
        %v434 = vld [vmem:[#allocation2] sm:$0xff]
        %v435 = vld [vmem:[#allocation2 + $0x8] sm:$0xff]
        %v436 = vld [vmem:[#allocation2 + $0x10] sm:$0xff]
        %v437 = vld [vmem:[#allocation2 + $0x18] sm:$0xff]
        %v438 = vld [vmem:[#allocation2 + $0x20] sm:$0xff]
        %v439 = vld [vmem:[#allocation2 + $0x28] sm:$0xff]
        %v440 = vld [vmem:[#allocation2 + $0x30] sm:$0xff]
        %v441 = vld [vmem:[#allocation2 + $0x38] sm:$0xff]
        %v442 = vld [vmem:[#allocation2 + $0x40] sm:$0xff]
        %v443 = vld [vmem:[#allocation2 + $0x48] sm:$0xff]
        %v444 = vld [vmem:[#allocation2 + $0x50] sm:$0xff]
        %v445 = vld [vmem:[#allocation2 + $0x58] sm:$0xff]
        %v446 = vld [vmem:[#allocation2 + $0x60] sm:$0xff]
        %v447 = vld [vmem:[#allocation2 + $0x68] sm:$0xff]
        %v448 = vld [vmem:[#allocation2 + $0x70] sm:$0xff]
        %v449 = vld [vmem:[#allocation2 + $0x78] sm:$0xff]
        %v450 = vld [vmem:[#allocation2 + $0x80] sm:$0xff]
        %v451 = vld [vmem:[#allocation2 + $0x88] sm:$0xff]
        %v452 = vld [vmem:[#allocation2 + $0x90] sm:$0xff]
        %v453 = vld [vmem:[#allocation2 + $0x98] sm:$0xff]
        %v454 = vld [vmem:[#allocation2 + $0xa0] sm:$0xff]
        %v455 = vld [vmem:[#allocation2 + $0xa8] sm:$0xff]
        %v456 = vld [vmem:[#allocation2 + $0xb0] sm:$0xff]
        %v457 = vld [vmem:[#allocation2 + $0xb8] sm:$0xff]
        %v458 = vld [vmem:[#allocation2 + $0xc0] sm:$0xff]
        %v459 = vld [vmem:[#allocation2 + $0xc8] sm:$0xff]
        %v460 = vld [vmem:[#allocation2 + $0xd0] sm:$0xff]
        %v461 = vld [vmem:[#allocation2 + $0xd8] sm:$0xff]
        %v462 = vld [vmem:[#allocation2 + $0xe0] sm:$0xff]
        %v463 = vld [vmem:[#allocation2 + $0xe8] sm:$0xff]
        %v464 = vld [vmem:[#allocation2 + $0xf0] sm:$0xff]
        %v465 = vld [vmem:[#allocation2 + $0xf8] sm:$0xff]
        %v466 = vld [vmem:[#allocation2 + $0x100] sm:$0xff]
        %v467 = vld [vmem:[#allocation2 + $0x108] sm:$0xff]
        %v468 = vld [vmem:[#allocation2 + $0x110] sm:$0xff]
        %v469 = vld [vmem:[#allocation2 + $0x118] sm:$0xff]
        %v470 = vld [vmem:[#allocation2 + $0x120] sm:$0xff]
        %v471 = vld [vmem:[#allocation2 + $0x128] sm:$0xff]
        %v472 = vld [vmem:[#allocation2 + $0x130] sm:$0xff]
        %v473 = vld [vmem:[#allocation2 + $0x138] sm:$0xff]
        %v474 = vld [vmem:[#allocation2 + $0x140] sm:$0xff]
        %v475 = vld [vmem:[#allocation2 + $0x148] sm:$0xff]
        %v476 = vld [vmem:[#allocation2 + $0x150] sm:$0xff]
        %v477 = vld [vmem:[#allocation2 + $0x158] sm:$0xff]
        %v478 = vld [vmem:[#allocation2 + $0x160] sm:$0xff]
        %v479 = vld [vmem:[#allocation2 + $0x168] sm:$0xff]
        %v480 = vld [vmem:[#allocation2 + $0x170] sm:$0xff]
        %v481 = vld [vmem:[#allocation2 + $0x178] sm:$0xff]
        %v482 = vld [vmem:[#allocation2 + $0x180] sm:$0xff]
        %v483 = vld [vmem:[#allocation2 + $0x188] sm:$0xff]
        %v484 = vld [vmem:[#allocation2 + $0x190] sm:$0xff]
        %v485 = vld [vmem:[#allocation2 + $0x198] sm:$0xff]
        %v486 = vld [vmem:[#allocation2 + $0x1a0] sm:$0xff]
        %v487 = vld [vmem:[#allocation2 + $0x1a8] sm:$0xff]
        %v488 = vld [vmem:[#allocation2 + $0x1b0] sm:$0xff]
        %v489 = vld [vmem:[#allocation2 + $0x1b8] sm:$0xff]
        %v490 = vld [vmem:[#allocation2 + $0x1c0] sm:$0xff]
        %v491 = vld [vmem:[#allocation2 + $0x1c8] sm:$0xff]
        %v492 = vld [vmem:[#allocation2 + $0x1d0] sm:$0xff]
        %v493 = vld [vmem:[#allocation2 + $0x1d8] sm:$0xff]
        %v494 = vld [vmem:[#allocation2 + $0x1e0] sm:$0xff]
        %v495 = vld [vmem:[#allocation2 + $0x1e8] sm:$0xff]
        %v496 = vld [vmem:[#allocation2 + $0x1f0] sm:$0xff]
        %v497 = vld [vmem:[%s247] sm:$0xff]
        %v498 = vld [vmem:[%s247 + $0x8] sm:$0xff]
        %v499 = vld [vmem:[%s247 + $0x10] sm:$0xff]
        %v500 = vld [vmem:[%s247 + $0x18] sm:$0xf]
        %v501 = vld [vmem:[%s247 + $0x1c] sm:$0xff]
        %v502 = vld [vmem:[%s247 + $0x24] sm:$0xff]
        %v503 = vld [vmem:[%s247 + $0x2c] sm:$0xff]
        %v504 = vld [vmem:[%s247 + $0x34] sm:$0xf]
        %v505 = vld [vmem:[%s247 + $0x38] sm:$0xff]
        %v506 = vld [vmem:[%s247 + $0x40] sm:$0xff]
        %v507 = vld [vmem:[%s247 + $0x48] sm:$0xff]
        %v508 = vld [vmem:[%s247 + $0x50] sm:$0xf]
        %v509 = vld [vmem:[%s247 + $0x54] sm:$0xff]
        %v510 = vld [vmem:[%s247 + $0x5c] sm:$0xff]
        %v511 = vld [vmem:[%s247 + $0x64] sm:$0xff]
        %v512 = vld [vmem:[%s247 + $0x6c] sm:$0xf]
        %v513 = vld [vmem:[%s247 + $0x70] sm:$0xff]
        %v514 = vld [vmem:[%s247 + $0x78] sm:$0xff]
        %v515 = vld [vmem:[%s247 + $0x80] sm:$0xff]
        %v516 = vld [vmem:[%s247 + $0x88] sm:$0xf]
        %v517 = vld [vmem:[%s247 + $0x8c] sm:$0xff]
        %v518 = vld [vmem:[%s247 + $0x94] sm:$0xff]
        %v519 = vld [vmem:[%s247 + $0x9c] sm:$0xff]
        %v520 = vld [vmem:[%s247 + $0xa4] sm:$0xf]
        %v521 = vld [vmem:[%s247 + $0xa8] sm:$0xff]
        %v522 = vld [vmem:[%s247 + $0xb0] sm:$0xff]
        %v523 = vld [vmem:[%s247 + $0xb8] sm:$0xff]
        %v524 = vld [vmem:[%s247 + $0xc0] sm:$0xf]
        %v525 = vld [vmem:[%s247 + $0xc4] sm:$0xff]
        %v526 = vld [vmem:[%s247 + $0xcc] sm:$0xff]
        %v527 = vld [vmem:[%s247 + $0xd4] sm:$0xff]
        %v528 = vld [vmem:[%s247 + $0xdc] sm:$0xf]
        %v529 = vld [vmem:[%s247 + $0xe0] sm:$0xff]
        %v530 = vld [vmem:[%s247 + $0xe8] sm:$0xff]
        %v531 = vld [vmem:[%s247 + $0xf0] sm:$0xff]
        %v532 = vld [vmem:[%s247 + $0xf8] sm:$0xf]
        %v533 = vld [vmem:[%s247 + $0xfc] sm:$0xff]
        %v534 = vld [vmem:[%s247 + $0x104] sm:$0xff]
        %v535 = vld [vmem:[%s247 + $0x10c] sm:$0xff]
        %v536 = vld [vmem:[%s247 + $0x114] sm:$0xf]
        %v537 = vld [vmem:[%s247 + $0x118] sm:$0xff]
        %v538 = vld [vmem:[%s247 + $0x120] sm:$0xff]
        %v539 = vld [vmem:[%s247 + $0x128] sm:$0xff]
        %v540 = vld [vmem:[%s247 + $0x130] sm:$0xf]
        %v541 = vld [vmem:[%s247 + $0x134] sm:$0xff]
        %v542 = vld [vmem:[%s247 + $0x13c] sm:$0xff]
        %v543 = vld [vmem:[%s247 + $0x144] sm:$0xff]
        %v544 = vld [vmem:[%s247 + $0x14c] sm:$0xf]
        %v545 = vld [vmem:[%s247 + $0x150] sm:$0xff]
        %v546 = vld [vmem:[%s247 + $0x158] sm:$0xff]
        %v547 = vld [vmem:[%s247 + $0x160] sm:$0xff]
        %v548 = vld [vmem:[%s247 + $0x168] sm:$0xf]
        %v549 = vld [vmem:[%s247 + $0x16c] sm:$0xff]
        %v550 = vld [vmem:[%s247 + $0x174] sm:$0xff]
        %v551 = vld [vmem:[%s247 + $0x17c] sm:$0xff]
        %v552 = vld [vmem:[%s247 + $0x184] sm:$0xf]
        %v553 = vld [vmem:[%s247 + $0x188] sm:$0xff]
        %v554 = vld [vmem:[%s247 + $0x190] sm:$0xff]
        %v555 = vld [vmem:[%s247 + $0x198] sm:$0xff]
        %v556 = vld [vmem:[%s247 + $0x1a0] sm:$0xf]
        %v557 = vld [vmem:[%s247 + $0x1a4] sm:$0xff]
        %v558 = vld [vmem:[%s247 + $0x1ac] sm:$0xff]
        %v559 = vld [vmem:[%s247 + $0x1b4] sm:$0xff]
        %v560 = vld [vmem:[%s247 + $0x1bc] sm:$0xf]
        %v561 = vld [vmem:[%s247 + $0x1c0] sm:$0xff]
        %v562 = vld [vmem:[%s247 + $0x1c8] sm:$0xff]
        %v563 = vld [vmem:[%s247 + $0x1d0] sm:$0xff]
        %v564 = vld [vmem:[%s247 + $0x1d8] sm:$0xf]
        %v565 = vld [vmem:[%s247 + $0x1dc] sm:$0xff]
        %v566 = vld [vmem:[%s247 + $0x1e4] sm:$0xff]
        %v567 = vld [vmem:[%s247 + $0x1ec] sm:$0xff]
        %v568 = vld [vmem:[%s247 + $0x1f4] sm:$0xf]
        %v641 = vunpack.c.l.b16 %v497
        %v642 = vunpack.c.h.b16 %v497
        %v643 = vunpack.c.l.b16 %v498
        %v644 = vunpack.c.h.b16 %v498
        %v645 = vunpack.c.l.b16 %v499
        %v646 = vunpack.c.h.b16 %v499
        %v647 = vunpack.c.l.b16 %v500
        %v648 = vunpack.c.l.b16 %v501
        %v649 = vunpack.c.h.b16 %v501
        %v650 = vunpack.c.l.b16 %v502
        %v651 = vunpack.c.h.b16 %v502
        %v652 = vunpack.c.l.b16 %v503
        %v653 = vunpack.c.h.b16 %v503
        %v654 = vunpack.c.l.b16 %v504
        %v655 = vunpack.c.l.b16 %v505
        %v656 = vunpack.c.h.b16 %v505
        %v657 = vunpack.c.l.b16 %v506
        %v658 = vunpack.c.h.b16 %v506
        %v659 = vunpack.c.l.b16 %v507
        %v660 = vunpack.c.h.b16 %v507
        %v661 = vunpack.c.l.b16 %v508
        %v662 = vunpack.c.l.b16 %v509
        %v663 = vunpack.c.h.b16 %v509
        %v664 = vunpack.c.l.b16 %v510
        %v665 = vunpack.c.h.b16 %v510
        %v666 = vunpack.c.l.b16 %v511
        %v667 = vunpack.c.h.b16 %v511
        %v668 = vunpack.c.l.b16 %v512
        %v669 = vunpack.c.l.b16 %v513
        %v670 = vunpack.c.h.b16 %v513
        %v671 = vunpack.c.l.b16 %v514
        %v672 = vunpack.c.h.b16 %v514
        %v673 = vunpack.c.l.b16 %v515
        %v674 = vunpack.c.h.b16 %v515
        %v675 = vunpack.c.l.b16 %v516
        %v676 = vunpack.c.l.b16 %v517
        %v677 = vunpack.c.h.b16 %v517
        %v678 = vunpack.c.l.b16 %v518
        %v679 = vunpack.c.h.b16 %v518
        %v680 = vunpack.c.l.b16 %v519
        %v681 = vunpack.c.h.b16 %v519
        %v682 = vunpack.c.l.b16 %v520
        %v683 = vunpack.c.l.b16 %v521
        %v684 = vunpack.c.h.b16 %v521
        %v685 = vunpack.c.l.b16 %v522
        %v686 = vunpack.c.h.b16 %v522
        %v687 = vunpack.c.l.b16 %v523
        %v688 = vunpack.c.h.b16 %v523
        %v689 = vunpack.c.l.b16 %v524
        %v690 = vunpack.c.l.b16 %v525
        %v691 = vunpack.c.h.b16 %v525
        %v692 = vunpack.c.l.b16 %v526
        %v693 = vunpack.c.h.b16 %v526
        %v694 = vunpack.c.l.b16 %v527
        %v695 = vunpack.c.h.b16 %v527
        %v696 = vunpack.c.l.b16 %v528
        %v697 = vunpack.c.l.b16 %v529
        %v698 = vunpack.c.h.b16 %v529
        %v699 = vunpack.c.l.b16 %v530
        %v700 = vunpack.c.h.b16 %v530
        %v701 = vunpack.c.l.b16 %v531
        %v702 = vunpack.c.h.b16 %v531
        %v703 = vunpack.c.l.b16 %v532
        %v704 = vunpack.c.l.b16 %v533
        %v705 = vunpack.c.h.b16 %v533
        %v706 = vunpack.c.l.b16 %v534
        %v707 = vunpack.c.h.b16 %v534
        %v708 = vunpack.c.l.b16 %v535
        %v709 = vunpack.c.h.b16 %v535
        %v710 = vunpack.c.l.b16 %v536
        %v711 = vunpack.c.l.b16 %v537
        %v712 = vunpack.c.h.b16 %v537
        %v713 = vunpack.c.l.b16 %v538
        %v714 = vunpack.c.h.b16 %v538
        %v715 = vunpack.c.l.b16 %v539
        %v716 = vunpack.c.h.b16 %v539
        %v717 = vunpack.c.l.b16 %v540
        %v718 = vunpack.c.l.b16 %v541
        %v719 = vunpack.c.h.b16 %v541
        %v720 = vunpack.c.l.b16 %v542
        %v721 = vunpack.c.h.b16 %v542
        %v722 = vunpack.c.l.b16 %v543
        %v723 = vunpack.c.h.b16 %v543
        %v724 = vunpack.c.l.b16 %v544
        %v725 = vunpack.c.l.b16 %v545
        %v726 = vunpack.c.h.b16 %v545
        %v727 = vunpack.c.l.b16 %v546
        %v728 = vunpack.c.h.b16 %v546
        %v729 = vunpack.c.l.b16 %v547
        %v730 = vunpack.c.h.b16 %v547
        %v731 = vunpack.c.l.b16 %v548
        %v732 = vunpack.c.l.b16 %v549
        %v733 = vunpack.c.h.b16 %v549
        %v734 = vunpack.c.l.b16 %v550
        %v735 = vunpack.c.h.b16 %v550
        %v736 = vunpack.c.l.b16 %v551
        %v737 = vunpack.c.h.b16 %v551
        %v738 = vunpack.c.l.b16 %v552
        %v739 = vunpack.c.l.b16 %v553
        %v740 = vunpack.c.h.b16 %v553
        %v741 = vunpack.c.l.b16 %v554
        %v742 = vunpack.c.h.b16 %v554
        %v743 = vunpack.c.l.b16 %v555
        %v744 = vunpack.c.h.b16 %v555
        %v745 = vunpack.c.l.b16 %v556
        %v746 = vunpack.c.l.b16 %v557
        %v747 = vunpack.c.h.b16 %v557
        %v748 = vunpack.c.l.b16 %v558
        %v749 = vunpack.c.h.b16 %v558
        %v750 = vunpack.c.l.b16 %v559
        %v751 = vunpack.c.h.b16 %v559
        %v752 = vunpack.c.l.b16 %v560
        %v753 = vunpack.c.l.b16 %v561
        %v754 = vunpack.c.h.b16 %v561
        %v755 = vunpack.c.l.b16 %v562
        %v756 = vunpack.c.h.b16 %v562
        %v757 = vunpack.c.l.b16 %v563
        %v758 = vunpack.c.h.b16 %v563
        %v759 = vunpack.c.l.b16 %v564
        %v760 = vunpack.c.l.b16 %v565
        %v761 = vunpack.c.h.b16 %v565
        %v762 = vunpack.c.l.b16 %v566
        %v763 = vunpack.c.h.b16 %v566
        %v764 = vunpack.c.l.b16 %v567
        %v765 = vunpack.c.h.b16 %v567
        %v766 = vunpack.c.l.b16 %v568
        %v767 = vpack.c.b16 %v648, %v641
        %v768 = vpack.c.b16 %v649, %v642
        %v769 = vpack.c.b16 %v650, %v643
        %v770 = vpack.c.b16 %v651, %v644
        %v771 = vpack.c.b16 %v652, %v645
        %v772 = vpack.c.b16 %v653, %v646
        %v773 = vpack.c.b16 %v654, %v647
        %v774 = vpack.c.b16 %v662, %v655
        %v775 = vpack.c.b16 %v663, %v656
        %v776 = vpack.c.b16 %v664, %v657
        %v777 = vpack.c.b16 %v665, %v658
        %v778 = vpack.c.b16 %v666, %v659
        %v779 = vpack.c.b16 %v667, %v660
        %v780 = vpack.c.b16 %v668, %v661
        %v781 = vpack.c.b16 %v676, %v669
        %v782 = vpack.c.b16 %v677, %v670
        %v783 = vpack.c.b16 %v678, %v671
        %v784 = vpack.c.b16 %v679, %v672
        %v785 = vpack.c.b16 %v680, %v673
        %v786 = vpack.c.b16 %v681, %v674
        %v787 = vpack.c.b16 %v682, %v675
        %v788 = vpack.c.b16 %v690, %v683
        %v789 = vpack.c.b16 %v691, %v684
        %v790 = vpack.c.b16 %v692, %v685
        %v791 = vpack.c.b16 %v693, %v686
        %v792 = vpack.c.b16 %v694, %v687
        %v793 = vpack.c.b16 %v695, %v688
        %v794 = vpack.c.b16 %v696, %v689
        %v795 = vpack.c.b16 %v704, %v697
        %v796 = vpack.c.b16 %v705, %v698
        %v797 = vpack.c.b16 %v706, %v699
        %v798 = vpack.c.b16 %v707, %v700
        %v799 = vpack.c.b16 %v708, %v701
        %v800 = vpack.c.b16 %v709, %v702
        %v801 = vpack.c.b16 %v710, %v703
        %v802 = vpack.c.b16 %v718, %v711
        %v803 = vpack.c.b16 %v719, %v712
        %v804 = vpack.c.b16 %v720, %v713
        %v805 = vpack.c.b16 %v721, %v714
        %v806 = vpack.c.b16 %v722, %v715
        %v807 = vpack.c.b16 %v723, %v716
        %v808 = vpack.c.b16 %v724, %v717
        %v809 = vpack.c.b16 %v732, %v725
        %v810 = vpack.c.b16 %v733, %v726
        %v811 = vpack.c.b16 %v734, %v727
        %v812 = vpack.c.b16 %v735, %v728
        %v813 = vpack.c.b16 %v736, %v729
        %v814 = vpack.c.b16 %v737, %v730
        %v815 = vpack.c.b16 %v738, %v731
        %v816 = vpack.c.b16 %v746, %v739
        %v817 = vpack.c.b16 %v747, %v740
        %v818 = vpack.c.b16 %v748, %v741
        %v819 = vpack.c.b16 %v749, %v742
        %v820 = vpack.c.b16 %v750, %v743
        %v821 = vpack.c.b16 %v751, %v744
        %v822 = vpack.c.b16 %v752, %v745
        %v823 = vpack.c.b16 %v760, %v753
        %v824 = vpack.c.b16 %v761, %v754
        %v825 = vpack.c.b16 %v762, %v755
        %v826 = vpack.c.b16 %v763, %v756
        %v827 = vpack.c.b16 %v764, %v757
        %v828 = vpack.c.b16 %v765, %v758
        %v829 = vpack.c.b16 %v766, %v759
        %vm893 = vcmask 130048
        %v895 = vsel %vm893, %v425, 0
        %v898 = vsel %vm893, %v427, 0
        %v901 = vsel %vm893, %v429, 0
        %v904 = vsel %vm893, %v431, 0
        %v907 = vsel %vm893, %v433, 0
        %909 = vmatpush.bf16.msra.mxu0 %v816
        %910 = vmatpush.bf16.msra.mxu0 %v809
        %911 = vmatpush.bf16.msra.mxu0 %v802
        %912 = vmatpush.bf16.msra.mxu0 %v795
        %913 = vmatpush.bf16.msra.mxu0 %v788
        %914 = vmatpush.bf16.msra.mxu0 %v781
        %915 = vmatpush.bf16.msra.mxu0 %v774
        %916 = vmatpush.bf16.msra.mxu0 %v767
        %917 = vmatmul.bf16.gmra.mxu0 %v424
        %v918 = vpop.f32.mrf.mxu0
        %v919 = vadd.f32 0.0, %v918
        %v920 = vpop.f32.mrf.mxu0
        %v921 = vadd.f32 0.0, %v920
        %922 = vmatmul.bf16.gmra.mxu0 %v426
        %v923 = vpop.f32.mrf.mxu0
        %v924 = vadd.f32 0.0, %v923
        %v925 = vpop.f32.mrf.mxu0
        %v926 = vadd.f32 0.0, %v925
        %927 = vmatmul.bf16.gmra.mxu0 %v428
        %v928 = vpop.f32.mrf.mxu0
        %v929 = vadd.f32 0.0, %v928
        %v930 = vpop.f32.mrf.mxu0
        %v931 = vadd.f32 0.0, %v930
        %932 = vmatmul.bf16.gmra.mxu0 %v430
        %v933 = vpop.f32.mrf.mxu0
        %v934 = vadd.f32 0.0, %v933
        %v935 = vpop.f32.mrf.mxu0
        %v936 = vadd.f32 0.0, %v935
        %937 = vmatmul.bf16.gmra.mxu0 %v432
        %v938 = vpop.f32.mrf.mxu0
        %v939 = vadd.f32 0.0, %v938
        %v940 = vpop.f32.mrf.mxu0
        %941 = vdwg.mxu0
        %942 = vmatpush.bf16.msra.mxu0 0
        %943 = vmatpush.bf16.msra.mxu0 0
        %944 = vmatpush.bf16.msra.mxu0 0
        %945 = vmatpush.bf16.msra.mxu0 0
        %946 = vmatpush.bf16.msra.mxu0 0
        %947 = vmatpush.bf16.msra.mxu0 0
        %948 = vmatpush.bf16.msra.mxu0 0
        %949 = vmatpush.bf16.msra.mxu0 %v823
        %950 = vmatmul.bf16.gmra.mxu0 %v895
        %v951 = vpop.f32.mrf.mxu0
        %v952 = vadd.f32 %v919, %v951
        %v953 = vpop.f32.mrf.mxu0
        %v954 = vadd.f32 %v921, %v953
        %955 = vmatmul.bf16.gmra.mxu0 %v898
        %v956 = vpop.f32.mrf.mxu0
        %v957 = vadd.f32 %v924, %v956
        %v958 = vpop.f32.mrf.mxu0
        %v959 = vadd.f32 %v926, %v958
        %960 = vmatmul.bf16.gmra.mxu0 %v901
        %v961 = vpop.f32.mrf.mxu0
        %v962 = vadd.f32 %v929, %v961
        %v963 = vpop.f32.mrf.mxu0
        %v964 = vadd.f32 %v931, %v963
        %965 = vmatmul.bf16.gmra.mxu0 %v904
        %v966 = vpop.f32.mrf.mxu0
        %v967 = vadd.f32 %v934, %v966
        %v968 = vpop.f32.mrf.mxu0
        %v969 = vadd.f32 %v936, %v968
        %970 = vmatmul.bf16.gmra.mxu0 %v907
        %v971 = vpop.f32.mrf.mxu0
        %v972 = vadd.f32 %v939, %v971
        %v973 = vpop.f32.mrf.mxu0
        %974 = vdwg.mxu0
        %975 = vmatpush.bf16.msra.mxu0 %v817
        %976 = vmatpush.bf16.msra.mxu0 %v810
        %977 = vmatpush.bf16.msra.mxu0 %v803
        %978 = vmatpush.bf16.msra.mxu0 %v796
        %979 = vmatpush.bf16.msra.mxu0 %v789
        %980 = vmatpush.bf16.msra.mxu0 %v782
        %981 = vmatpush.bf16.msra.mxu0 %v775
        %982 = vmatpush.bf16.msra.mxu0 %v768
        %983 = vmatmul.bf16.gmra.mxu0 %v424
        %v984 = vpop.f32.mrf.mxu0
        %v985 = vadd.f32 0.0, %v984
        %v986 = vpop.f32.mrf.mxu0
        %v987 = vadd.f32 0.0, %v986
        %988 = vmatmul.bf16.gmra.mxu0 %v426
        %v989 = vpop.f32.mrf.mxu0
        %v990 = vadd.f32 0.0, %v989
        %v991 = vpop.f32.mrf.mxu0
        %v992 = vadd.f32 0.0, %v991
        %993 = vmatmul.bf16.gmra.mxu0 %v428
        %v994 = vpop.f32.mrf.mxu0
        %v995 = vadd.f32 0.0, %v994
        %v996 = vpop.f32.mrf.mxu0
        %v997 = vadd.f32 0.0, %v996
        %998 = vmatmul.bf16.gmra.mxu0 %v430
        %v999 = vpop.f32.mrf.mxu0
        %v1000 = vadd.f32 0.0, %v999
        %v1001 = vpop.f32.mrf.mxu0
        %v1002 = vadd.f32 0.0, %v1001
        %1003 = vmatmul.bf16.gmra.mxu0 %v432
        %v1004 = vpop.f32.mrf.mxu0
        %v1005 = vadd.f32 0.0, %v1004
        %v1006 = vpop.f32.mrf.mxu0
        %1007 = vdwg.mxu0
        %1008 = vmatpush.bf16.msra.mxu0 0
        %1009 = vmatpush.bf16.msra.mxu0 0
        %1010 = vmatpush.bf16.msra.mxu0 0
        %1011 = vmatpush.bf16.msra.mxu0 0
        %1012 = vmatpush.bf16.msra.mxu0 0
        %1013 = vmatpush.bf16.msra.mxu0 0
        %1014 = vmatpush.bf16.msra.mxu0 0
        %1015 = vmatpush.bf16.msra.mxu0 %v824
        %1016 = vmatmul.bf16.gmra.mxu0 %v895
        %v1017 = vpop.f32.mrf.mxu0
        %v1018 = vadd.f32 %v985, %v1017
        %v1019 = vpop.f32.mrf.mxu0
        %v1020 = vadd.f32 %v987, %v1019
        %1021 = vmatmul.bf16.gmra.mxu0 %v898
        %v1022 = vpop.f32.mrf.mxu0
        %v1023 = vadd.f32 %v990, %v1022
        %v1024 = vpop.f32.mrf.mxu0
        %v1025 = vadd.f32 %v992, %v1024
        %1026 = vmatmul.bf16.gmra.mxu0 %v901
        %v1027 = vpop.f32.mrf.mxu0
        %v1028 = vadd.f32 %v995, %v1027
        %v1029 = vpop.f32.mrf.mxu0
        %v1030 = vadd.f32 %v997, %v1029
        %1031 = vmatmul.bf16.gmra.mxu0 %v904
        %v1032 = vpop.f32.mrf.mxu0
        %v1033 = vadd.f32 %v1000, %v1032
        %v1034 = vpop.f32.mrf.mxu0
        %v1035 = vadd.f32 %v1002, %v1034
        %1036 = vmatmul.bf16.gmra.mxu0 %v907
        %v1037 = vpop.f32.mrf.mxu0
        %v1038 = vadd.f32 %v1005, %v1037
        %v1039 = vpop.f32.mrf.mxu0
        %1040 = vdwg.mxu0
        %1041 = vmatpush.bf16.msra.mxu0 %v818
        %1042 = vmatpush.bf16.msra.mxu0 %v811
        %1043 = vmatpush.bf16.msra.mxu0 %v804
        %1044 = vmatpush.bf16.msra.mxu0 %v797
        %1045 = vmatpush.bf16.msra.mxu0 %v790
        %1046 = vmatpush.bf16.msra.mxu0 %v783
        %1047 = vmatpush.bf16.msra.mxu0 %v776
        %1048 = vmatpush.bf16.msra.mxu0 %v769
        %1049 = vmatmul.bf16.gmra.mxu0 %v424
        %v1050 = vpop.f32.mrf.mxu0
        %v1051 = vadd.f32 0.0, %v1050
        %v1052 = vpop.f32.mrf.mxu0
        %v1053 = vadd.f32 0.0, %v1052
        %1054 = vmatmul.bf16.gmra.mxu0 %v426
        %v1055 = vpop.f32.mrf.mxu0
        %v1056 = vadd.f32 0.0, %v1055
        %v1057 = vpop.f32.mrf.mxu0
        %v1058 = vadd.f32 0.0, %v1057
        %1059 = vmatmul.bf16.gmra.mxu0 %v428
        %v1060 = vpop.f32.mrf.mxu0
        %v1061 = vadd.f32 0.0, %v1060
        %v1062 = vpop.f32.mrf.mxu0
        %v1063 = vadd.f32 0.0, %v1062
        %1064 = vmatmul.bf16.gmra.mxu0 %v430
        %v1065 = vpop.f32.mrf.mxu0
        %v1066 = vadd.f32 0.0, %v1065
        %v1067 = vpop.f32.mrf.mxu0
        %v1068 = vadd.f32 0.0, %v1067
        %1069 = vmatmul.bf16.gmra.mxu0 %v432
        %v1070 = vpop.f32.mrf.mxu0
        %v1071 = vadd.f32 0.0, %v1070
        %v1072 = vpop.f32.mrf.mxu0
        %1073 = vdwg.mxu0
        %1074 = vmatpush.bf16.msra.mxu0 0
        %1075 = vmatpush.bf16.msra.mxu0 0
        %1076 = vmatpush.bf16.msra.mxu0 0
        %1077 = vmatpush.bf16.msra.mxu0 0
        %1078 = vmatpush.bf16.msra.mxu0 0
        %1079 = vmatpush.bf16.msra.mxu0 0
        %1080 = vmatpush.bf16.msra.mxu0 0
        %1081 = vmatpush.bf16.msra.mxu0 %v825
        %1082 = vmatmul.bf16.gmra.mxu0 %v895
        %v1083 = vpop.f32.mrf.mxu0
        %v1084 = vadd.f32 %v1051, %v1083
        %v1085 = vpop.f32.mrf.mxu0
        %v1086 = vadd.f32 %v1053, %v1085
        %1087 = vmatmul.bf16.gmra.mxu0 %v898
        %v1088 = vpop.f32.mrf.mxu0
        %v1089 = vadd.f32 %v1056, %v1088
        %v1090 = vpop.f32.mrf.mxu0
        %v1091 = vadd.f32 %v1058, %v1090
        %1092 = vmatmul.bf16.gmra.mxu0 %v901
        %v1093 = vpop.f32.mrf.mxu0
        %v1094 = vadd.f32 %v1061, %v1093
        %v1095 = vpop.f32.mrf.mxu0
        %v1096 = vadd.f32 %v1063, %v1095
        %1097 = vmatmul.bf16.gmra.mxu0 %v904
        %v1098 = vpop.f32.mrf.mxu0
        %v1099 = vadd.f32 %v1066, %v1098
        %v1100 = vpop.f32.mrf.mxu0
        %v1101 = vadd.f32 %v1068, %v1100
        %1102 = vmatmul.bf16.gmra.mxu0 %v907
        %v1103 = vpop.f32.mrf.mxu0
        %v1104 = vadd.f32 %v1071, %v1103
        %v1105 = vpop.f32.mrf.mxu0
        %1106 = vdwg.mxu0
        %1107 = vmatpush.bf16.msra.mxu0 %v819
        %1108 = vmatpush.bf16.msra.mxu0 %v812
        %1109 = vmatpush.bf16.msra.mxu0 %v805
        %1110 = vmatpush.bf16.msra.mxu0 %v798
        %1111 = vmatpush.bf16.msra.mxu0 %v791
        %1112 = vmatpush.bf16.msra.mxu0 %v784
        %1113 = vmatpush.bf16.msra.mxu0 %v777
        %1114 = vmatpush.bf16.msra.mxu0 %v770
        %1115 = vmatmul.bf16.gmra.mxu0 %v424
        %v1116 = vpop.f32.mrf.mxu0
        %v1117 = vadd.f32 0.0, %v1116
        %v1118 = vpop.f32.mrf.mxu0
        %v1119 = vadd.f32 0.0, %v1118
        %1120 = vmatmul.bf16.gmra.mxu0 %v426
        %v1121 = vpop.f32.mrf.mxu0
        %v1122 = vadd.f32 0.0, %v1121
        %v1123 = vpop.f32.mrf.mxu0
        %v1124 = vadd.f32 0.0, %v1123
        %1125 = vmatmul.bf16.gmra.mxu0 %v428
        %v1126 = vpop.f32.mrf.mxu0
        %v1127 = vadd.f32 0.0, %v1126
        %v1128 = vpop.f32.mrf.mxu0
        %v1129 = vadd.f32 0.0, %v1128
        %1130 = vmatmul.bf16.gmra.mxu0 %v430
        %v1131 = vpop.f32.mrf.mxu0
        %v1132 = vadd.f32 0.0, %v1131
        %v1133 = vpop.f32.mrf.mxu0
        %v1134 = vadd.f32 0.0, %v1133
        %1135 = vmatmul.bf16.gmra.mxu0 %v432
        %v1136 = vpop.f32.mrf.mxu0
        %v1137 = vadd.f32 0.0, %v1136
        %v1138 = vpop.f32.mrf.mxu0
        %1139 = vdwg.mxu0
        %1140 = vmatpush.bf16.msra.mxu0 0
        %1141 = vmatpush.bf16.msra.mxu0 0
        %1142 = vmatpush.bf16.msra.mxu0 0
        %1143 = vmatpush.bf16.msra.mxu0 0
        %1144 = vmatpush.bf16.msra.mxu0 0
        %1145 = vmatpush.bf16.msra.mxu0 0
        %1146 = vmatpush.bf16.msra.mxu0 0
        %1147 = vmatpush.bf16.msra.mxu0 %v826
        %1148 = vmatmul.bf16.gmra.mxu0 %v895
        %v1149 = vpop.f32.mrf.mxu0
        %v1150 = vadd.f32 %v1117, %v1149
        %v1151 = vpop.f32.mrf.mxu0
        %v1152 = vadd.f32 %v1119, %v1151
        %1153 = vmatmul.bf16.gmra.mxu0 %v898
        %v1154 = vpop.f32.mrf.mxu0
        %v1155 = vadd.f32 %v1122, %v1154
        %v1156 = vpop.f32.mrf.mxu0
        %v1157 = vadd.f32 %v1124, %v1156
        %1158 = vmatmul.bf16.gmra.mxu0 %v901
        %v1159 = vpop.f32.mrf.mxu0
        %v1160 = vadd.f32 %v1127, %v1159
        %v1161 = vpop.f32.mrf.mxu0
        %v1162 = vadd.f32 %v1129, %v1161
        %1163 = vmatmul.bf16.gmra.mxu0 %v904
        %v1164 = vpop.f32.mrf.mxu0
        %v1165 = vadd.f32 %v1132, %v1164
        %v1166 = vpop.f32.mrf.mxu0
        %v1167 = vadd.f32 %v1134, %v1166
        %1168 = vmatmul.bf16.gmra.mxu0 %v907
        %v1169 = vpop.f32.mrf.mxu0
        %v1170 = vadd.f32 %v1137, %v1169
        %v1171 = vpop.f32.mrf.mxu0
        %1172 = vdwg.mxu0
        %1173 = vmatpush.bf16.msra.mxu0 %v820
        %1174 = vmatpush.bf16.msra.mxu0 %v813
        %1175 = vmatpush.bf16.msra.mxu0 %v806
        %1176 = vmatpush.bf16.msra.mxu0 %v799
        %1177 = vmatpush.bf16.msra.mxu0 %v792
        %1178 = vmatpush.bf16.msra.mxu0 %v785
        %1179 = vmatpush.bf16.msra.mxu0 %v778
        %1180 = vmatpush.bf16.msra.mxu0 %v771
        %1181 = vmatmul.bf16.gmra.mxu0 %v424
        %v1182 = vpop.f32.mrf.mxu0
        %v1183 = vadd.f32 0.0, %v1182
        %v1184 = vpop.f32.mrf.mxu0
        %v1185 = vadd.f32 0.0, %v1184
        %1186 = vmatmul.bf16.gmra.mxu0 %v426
        %v1187 = vpop.f32.mrf.mxu0
        %v1188 = vadd.f32 0.0, %v1187
        %v1189 = vpop.f32.mrf.mxu0
        %v1190 = vadd.f32 0.0, %v1189
        %1191 = vmatmul.bf16.gmra.mxu0 %v428
        %v1192 = vpop.f32.mrf.mxu0
        %v1193 = vadd.f32 0.0, %v1192
        %v1194 = vpop.f32.mrf.mxu0
        %v1195 = vadd.f32 0.0, %v1194
        %1196 = vmatmul.bf16.gmra.mxu0 %v430
        %v1197 = vpop.f32.mrf.mxu0
        %v1198 = vadd.f32 0.0, %v1197
        %v1199 = vpop.f32.mrf.mxu0
        %v1200 = vadd.f32 0.0, %v1199
        %1201 = vmatmul.bf16.gmra.mxu0 %v432
        %v1202 = vpop.f32.mrf.mxu0
        %v1203 = vadd.f32 0.0, %v1202
        %v1204 = vpop.f32.mrf.mxu0
        %1205 = vdwg.mxu0
        %1206 = vmatpush.bf16.msra.mxu0 0
        %1207 = vmatpush.bf16.msra.mxu0 0
        %1208 = vmatpush.bf16.msra.mxu0 0
        %1209 = vmatpush.bf16.msra.mxu0 0
        %1210 = vmatpush.bf16.msra.mxu0 0
        %1211 = vmatpush.bf16.msra.mxu0 0
        %1212 = vmatpush.bf16.msra.mxu0 0
        %1213 = vmatpush.bf16.msra.mxu0 %v827
        %1214 = vmatmul.bf16.gmra.mxu0 %v895
        %v1215 = vpop.f32.mrf.mxu0
        %v1216 = vadd.f32 %v1183, %v1215
        %v1217 = vpop.f32.mrf.mxu0
        %v1218 = vadd.f32 %v1185, %v1217
        %1219 = vmatmul.bf16.gmra.mxu0 %v898
        %v1220 = vpop.f32.mrf.mxu0
        %v1221 = vadd.f32 %v1188, %v1220
        %v1222 = vpop.f32.mrf.mxu0
        %v1223 = vadd.f32 %v1190, %v1222
        %1224 = vmatmul.bf16.gmra.mxu0 %v901
        %v1225 = vpop.f32.mrf.mxu0
        %v1226 = vadd.f32 %v1193, %v1225
        %v1227 = vpop.f32.mrf.mxu0
        %v1228 = vadd.f32 %v1195, %v1227
        %1229 = vmatmul.bf16.gmra.mxu0 %v904
        %v1230 = vpop.f32.mrf.mxu0
        %v1231 = vadd.f32 %v1198, %v1230
        %v1232 = vpop.f32.mrf.mxu0
        %v1233 = vadd.f32 %v1200, %v1232
        %1234 = vmatmul.bf16.gmra.mxu0 %v907
        %v1235 = vpop.f32.mrf.mxu0
        %v1236 = vadd.f32 %v1203, %v1235
        %v1237 = vpop.f32.mrf.mxu0
        %1238 = vdwg.mxu0
        %1239 = vmatpush.bf16.msra.mxu0 %v821
        %1240 = vmatpush.bf16.msra.mxu0 %v814
        %1241 = vmatpush.bf16.msra.mxu0 %v807
        %1242 = vmatpush.bf16.msra.mxu0 %v800
        %1243 = vmatpush.bf16.msra.mxu0 %v793
        %1244 = vmatpush.bf16.msra.mxu0 %v786
        %1245 = vmatpush.bf16.msra.mxu0 %v779
        %1246 = vmatpush.bf16.msra.mxu0 %v772
        %1247 = vmatmul.bf16.gmra.mxu0 %v424
        %v1248 = vpop.f32.mrf.mxu0
        %v1249 = vadd.f32 0.0, %v1248
        %v1250 = vpop.f32.mrf.mxu0
        %v1251 = vadd.f32 0.0, %v1250
        %1252 = vmatmul.bf16.gmra.mxu0 %v426
        %v1253 = vpop.f32.mrf.mxu0
        %v1254 = vadd.f32 0.0, %v1253
        %v1255 = vpop.f32.mrf.mxu0
        %v1256 = vadd.f32 0.0, %v1255
        %1257 = vmatmul.bf16.gmra.mxu0 %v428
        %v1258 = vpop.f32.mrf.mxu0
        %v1259 = vadd.f32 0.0, %v1258
        %v1260 = vpop.f32.mrf.mxu0
        %v1261 = vadd.f32 0.0, %v1260
        %1262 = vmatmul.bf16.gmra.mxu0 %v430
        %v1263 = vpop.f32.mrf.mxu0
        %v1264 = vadd.f32 0.0, %v1263
        %v1265 = vpop.f32.mrf.mxu0
        %v1266 = vadd.f32 0.0, %v1265
        %1267 = vmatmul.bf16.gmra.mxu0 %v432
        %v1268 = vpop.f32.mrf.mxu0
        %v1269 = vadd.f32 0.0, %v1268
        %v1270 = vpop.f32.mrf.mxu0
        %1271 = vdwg.mxu0
        %1272 = vmatpush.bf16.msra.mxu0 0
        %1273 = vmatpush.bf16.msra.mxu0 0
        %1274 = vmatpush.bf16.msra.mxu0 0
        %1275 = vmatpush.bf16.msra.mxu0 0
        %1276 = vmatpush.bf16.msra.mxu0 0
        %1277 = vmatpush.bf16.msra.mxu0 0
        %1278 = vmatpush.bf16.msra.mxu0 0
        %1279 = vmatpush.bf16.msra.mxu0 %v828
        %1280 = vmatmul.bf16.gmra.mxu0 %v895
        %v1281 = vpop.f32.mrf.mxu0
        %v1282 = vadd.f32 %v1249, %v1281
        %v1283 = vpop.f32.mrf.mxu0
        %v1284 = vadd.f32 %v1251, %v1283
        %1285 = vmatmul.bf16.gmra.mxu0 %v898
        %v1286 = vpop.f32.mrf.mxu0
        %v1287 = vadd.f32 %v1254, %v1286
        %v1288 = vpop.f32.mrf.mxu0
        %v1289 = vadd.f32 %v1256, %v1288
        %1290 = vmatmul.bf16.gmra.mxu0 %v901
        %v1291 = vpop.f32.mrf.mxu0
        %v1292 = vadd.f32 %v1259, %v1291
        %v1293 = vpop.f32.mrf.mxu0
        %v1294 = vadd.f32 %v1261, %v1293
        %1295 = vmatmul.bf16.gmra.mxu0 %v904
        %v1296 = vpop.f32.mrf.mxu0
        %v1297 = vadd.f32 %v1264, %v1296
        %v1298 = vpop.f32.mrf.mxu0
        %v1299 = vadd.f32 %v1266, %v1298
        %1300 = vmatmul.bf16.gmra.mxu0 %v907
        %v1301 = vpop.f32.mrf.mxu0
        %v1302 = vadd.f32 %v1269, %v1301
        %v1303 = vpop.f32.mrf.mxu0
        %1304 = vdwg.mxu0
        %1305 = vmatpush.bf16.msra.mxu0 %v822
        %1306 = vmatpush.bf16.msra.mxu0 %v815
        %1307 = vmatpush.bf16.msra.mxu0 %v808
        %1308 = vmatpush.bf16.msra.mxu0 %v801
        %1309 = vmatpush.bf16.msra.mxu0 %v794
        %1310 = vmatpush.bf16.msra.mxu0 %v787
        %1311 = vmatpush.bf16.msra.mxu0 %v780
        %1312 = vmatpush.bf16.msra.mxu0 %v773
        %1313 = vmatmul.bf16.gmra.mxu0 %v424
        %v1314 = vpop.f32.mrf.mxu0
        %v1315 = vadd.f32 0.0, %v1314
        %v1316 = vpop.f32.mrf.mxu0
        %v1317 = vadd.f32 0.0, %v1316
        %1318 = vmatmul.bf16.gmra.mxu0 %v426
        %v1319 = vpop.f32.mrf.mxu0
        %v1320 = vadd.f32 0.0, %v1319
        %v1321 = vpop.f32.mrf.mxu0
        %v1322 = vadd.f32 0.0, %v1321
        %1323 = vmatmul.bf16.gmra.mxu0 %v428
        %v1324 = vpop.f32.mrf.mxu0
        %v1325 = vadd.f32 0.0, %v1324
        %v1326 = vpop.f32.mrf.mxu0
        %v1327 = vadd.f32 0.0, %v1326
        %1328 = vmatmul.bf16.gmra.mxu0 %v430
        %v1329 = vpop.f32.mrf.mxu0
        %v1330 = vadd.f32 0.0, %v1329
        %v1331 = vpop.f32.mrf.mxu0
        %v1332 = vadd.f32 0.0, %v1331
        %1333 = vmatmul.bf16.gmra.mxu0 %v432
        %v1334 = vpop.f32.mrf.mxu0
        %v1335 = vadd.f32 0.0, %v1334
        %v1336 = vpop.f32.mrf.mxu0
        %1337 = vdwg.mxu0
        %1338 = vmatpush.bf16.msra.mxu0 0
        %1339 = vmatpush.bf16.msra.mxu0 0
        %1340 = vmatpush.bf16.msra.mxu0 0
        %1341 = vmatpush.bf16.msra.mxu0 0
        %1342 = vmatpush.bf16.msra.mxu0 0
        %1343 = vmatpush.bf16.msra.mxu0 0
        %1344 = vmatpush.bf16.msra.mxu0 0
        %1345 = vmatpush.bf16.msra.mxu0 %v829
        %1346 = vmatmul.bf16.gmra.mxu0 %v895
        %v1347 = vpop.f32.mrf.mxu0
        %v1348 = vadd.f32 %v1315, %v1347
        %v1349 = vpop.f32.mrf.mxu0
        %v1350 = vadd.f32 %v1317, %v1349
        %1351 = vmatmul.bf16.gmra.mxu0 %v898
        %v1352 = vpop.f32.mrf.mxu0
        %v1353 = vadd.f32 %v1320, %v1352
        %v1354 = vpop.f32.mrf.mxu0
        %v1355 = vadd.f32 %v1322, %v1354
        %1356 = vmatmul.bf16.gmra.mxu0 %v901
        %v1357 = vpop.f32.mrf.mxu0
        %v1358 = vadd.f32 %v1325, %v1357
        %v1359 = vpop.f32.mrf.mxu0
        %v1360 = vadd.f32 %v1327, %v1359
        %1361 = vmatmul.bf16.gmra.mxu0 %v904
        %v1362 = vpop.f32.mrf.mxu0
        %v1363 = vadd.f32 %v1330, %v1362
        %v1364 = vpop.f32.mrf.mxu0
        %v1365 = vadd.f32 %v1332, %v1364
        %1366 = vmatmul.bf16.gmra.mxu0 %v907
        %v1367 = vpop.f32.mrf.mxu0
        %v1368 = vadd.f32 %v1335, %v1367
        %v1369 = vpop.f32.mrf.mxu0
        %1370 = vdwg.mxu0
        %v1371 = vadd.f32 %v434, %v952
        %v1372 = vadd.f32 %v435, %v1018
        %v1373 = vadd.f32 %v436, %v1084
        %v1374 = vadd.f32 %v437, %v1150
        %v1375 = vadd.f32 %v438, %v1216
        %v1376 = vadd.f32 %v439, %v1282
        %v1377 = vadd.f32 %v440, %v1348
        %v1378 = vadd.f32 %v441, %v954
        %v1379 = vadd.f32 %v442, %v1020
        %v1380 = vadd.f32 %v443, %v1086
        %v1381 = vadd.f32 %v444, %v1152
        %v1382 = vadd.f32 %v445, %v1218
        %v1383 = vadd.f32 %v446, %v1284
        %v1384 = vadd.f32 %v447, %v1350
        %v1385 = vadd.f32 %v448, %v957
        %v1386 = vadd.f32 %v449, %v1023
        %v1387 = vadd.f32 %v450, %v1089
        %v1388 = vadd.f32 %v451, %v1155
        %v1389 = vadd.f32 %v452, %v1221
        %v1390 = vadd.f32 %v453, %v1287
        %v1391 = vadd.f32 %v454, %v1353
        %v1392 = vadd.f32 %v455, %v959
        %v1393 = vadd.f32 %v456, %v1025
        %v1394 = vadd.f32 %v457, %v1091
        %v1395 = vadd.f32 %v458, %v1157
        %v1396 = vadd.f32 %v459, %v1223
        %v1397 = vadd.f32 %v460, %v1289
        %v1398 = vadd.f32 %v461, %v1355
        %v1399 = vadd.f32 %v462, %v962
        %v1400 = vadd.f32 %v463, %v1028
        %v1401 = vadd.f32 %v464, %v1094
        %v1402 = vadd.f32 %v465, %v1160
        %v1403 = vadd.f32 %v466, %v1226
        %v1404 = vadd.f32 %v467, %v1292
        %v1405 = vadd.f32 %v468, %v1358
        %v1406 = vadd.f32 %v469, %v964
        %v1407 = vadd.f32 %v470, %v1030
        %v1408 = vadd.f32 %v471, %v1096
        %v1409 = vadd.f32 %v472, %v1162
        %v1410 = vadd.f32 %v473, %v1228
        %v1411 = vadd.f32 %v474, %v1294
        %v1412 = vadd.f32 %v475, %v1360
        %v1413 = vadd.f32 %v476, %v967
        %v1414 = vadd.f32 %v477, %v1033
        %v1415 = vadd.f32 %v478, %v1099
        %v1416 = vadd.f32 %v479, %v1165
        %v1417 = vadd.f32 %v480, %v1231
        %v1418 = vadd.f32 %v481, %v1297
        %v1419 = vadd.f32 %v482, %v1363
        %v1420 = vadd.f32 %v483, %v969
        %v1421 = vadd.f32 %v484, %v1035
        %v1422 = vadd.f32 %v485, %v1101
        %v1423 = vadd.f32 %v486, %v1167
        %v1424 = vadd.f32 %v487, %v1233
        %v1425 = vadd.f32 %v488, %v1299
        %v1426 = vadd.f32 %v489, %v1365
        %v1427 = vadd.f32 %v490, %v972
        %v1428 = vadd.f32 %v491, %v1038
        %v1429 = vadd.f32 %v492, %v1104
        %v1430 = vadd.f32 %v493, %v1170
        %v1431 = vadd.f32 %v494, %v1236
        %v1432 = vadd.f32 %v495, %v1302
        %v1433 = vadd.f32 %v496, %v1368
        %1434 = vst [vmem:[#allocation2] sm:$0xff] %v1371
        %1435 = vst [vmem:[#allocation2 + $0x8] sm:$0xff] %v1372
        %1436 = vst [vmem:[#allocation2 + $0x10] sm:$0xff] %v1373
        %1437 = vst [vmem:[#allocation2 + $0x18] sm:$0xff] %v1374
        %1438 = vst [vmem:[#allocation2 + $0x20] sm:$0xff] %v1375
        %1439 = vst [vmem:[#allocation2 + $0x28] sm:$0xff] %v1376
        %1440 = vst.msk [vmem:[#allocation2 + $0x30] sm:$0xff] %vm893, %v1377
        %1441 = vst [vmem:[#allocation2 + $0x38] sm:$0xff] %v1378
        %1442 = vst [vmem:[#allocation2 + $0x40] sm:$0xff] %v1379
        %1443 = vst [vmem:[#allocation2 + $0x48] sm:$0xff] %v1380
        %1444 = vst [vmem:[#allocation2 + $0x50] sm:$0xff] %v1381
        %1445 = vst [vmem:[#allocation2 + $0x58] sm:$0xff] %v1382
        %1446 = vst [vmem:[#allocation2 + $0x60] sm:$0xff] %v1383
        %1447 = vst.msk [vmem:[#allocation2 + $0x68] sm:$0xff] %vm893, %v1384
        %1448 = vst [vmem:[#allocation2 + $0x70] sm:$0xff] %v1385
        %1449 = vst [vmem:[#allocation2 + $0x78] sm:$0xff] %v1386
        %1450 = vst [vmem:[#allocation2 + $0x80] sm:$0xff] %v1387
        %1451 = vst [vmem:[#allocation2 + $0x88] sm:$0xff] %v1388
        %1452 = vst [vmem:[#allocation2 + $0x90] sm:$0xff] %v1389
        %1453 = vst [vmem:[#allocation2 + $0x98] sm:$0xff] %v1390
        %1454 = vst.msk [vmem:[#allocation2 + $0xa0] sm:$0xff] %vm893, %v1391
        %1455 = vst [vmem:[#allocation2 + $0xa8] sm:$0xff] %v1392
        %1456 = vst [vmem:[#allocation2 + $0xb0] sm:$0xff] %v1393
        %1457 = vst [vmem:[#allocation2 + $0xb8] sm:$0xff] %v1394
        %1458 = vst [vmem:[#allocation2 + $0xc0] sm:$0xff] %v1395
        %1459 = vst [vmem:[#allocation2 + $0xc8] sm:$0xff] %v1396
        %1460 = vst [vmem:[#allocation2 + $0xd0] sm:$0xff] %v1397
        %1461 = vst.msk [vmem:[#allocation2 + $0xd8] sm:$0xff] %vm893, %v1398
        %1462 = vst [vmem:[#allocation2 + $0xe0] sm:$0xff] %v1399
        %1463 = vst [vmem:[#allocation2 + $0xe8] sm:$0xff] %v1400
        %1464 = vst [vmem:[#allocation2 + $0xf0] sm:$0xff] %v1401
        %1465 = vst [vmem:[#allocation2 + $0xf8] sm:$0xff] %v1402
        %1466 = vst [vmem:[#allocation2 + $0x100] sm:$0xff] %v1403
        %1467 = vst [vmem:[#allocation2 + $0x108] sm:$0xff] %v1404
        %1468 = vst.msk [vmem:[#allocation2 + $0x110] sm:$0xff] %vm893, %v1405
        %1469 = vst [vmem:[#allocation2 + $0x118] sm:$0xff] %v1406
        %1470 = vst [vmem:[#allocation2 + $0x120] sm:$0xff] %v1407
        %1471 = vst [vmem:[#allocation2 + $0x128] sm:$0xff] %v1408
        %1472 = vst [vmem:[#allocation2 + $0x130] sm:$0xff] %v1409
        %1473 = vst [vmem:[#allocation2 + $0x138] sm:$0xff] %v1410
        %1474 = vst [vmem:[#allocation2 + $0x140] sm:$0xff] %v1411
        %1475 = vst.msk [vmem:[#allocation2 + $0x148] sm:$0xff] %vm893, %v1412
        %1476 = vst [vmem:[#allocation2 + $0x150] sm:$0xff] %v1413
        %1477 = vst [vmem:[#allocation2 + $0x158] sm:$0xff] %v1414
        %1478 = vst [vmem:[#allocation2 + $0x160] sm:$0xff] %v1415
        %1479 = vst [vmem:[#allocation2 + $0x168] sm:$0xff] %v1416
        %1480 = vst [vmem:[#allocation2 + $0x170] sm:$0xff] %v1417
        %1481 = vst [vmem:[#allocation2 + $0x178] sm:$0xff] %v1418
        %1482 = vst.msk [vmem:[#allocation2 + $0x180] sm:$0xff] %vm893, %v1419
        %1483 = vst [vmem:[#allocation2 + $0x188] sm:$0xff] %v1420
        %1484 = vst [vmem:[#allocation2 + $0x190] sm:$0xff] %v1421
        %1485 = vst [vmem:[#allocation2 + $0x198] sm:$0xff] %v1422
        %1486 = vst [vmem:[#allocation2 + $0x1a0] sm:$0xff] %v1423
        %1487 = vst [vmem:[#allocation2 + $0x1a8] sm:$0xff] %v1424
        %1488 = vst [vmem:[#allocation2 + $0x1b0] sm:$0xff] %v1425
        %1489 = vst.msk [vmem:[#allocation2 + $0x1b8] sm:$0xff] %vm893, %v1426
        %1490 = vst [vmem:[#allocation2 + $0x1c0] sm:$0xff] %v1427
        %1491 = vst [vmem:[#allocation2 + $0x1c8] sm:$0xff] %v1428
        %1492 = vst [vmem:[#allocation2 + $0x1d0] sm:$0xff] %v1429
        %1493 = vst [vmem:[#allocation2 + $0x1d8] sm:$0xff] %v1430
        %1494 = vst [vmem:[#allocation2 + $0x1e0] sm:$0xff] %v1431
        %1495 = vst [vmem:[#allocation2 + $0x1e8] sm:$0xff] %v1432
        %1496 = vst.msk [vmem:[#allocation2 + $0x1f0] sm:$0xff] %vm893, %v1433
        %p1497 = scmp.eq.s32.totalorder %s23, 2
        // Predicated region
        $region53: #{tpu_custom_call.1} parent=39 // pred_check
          %p1498 = pneg %p1497
        $region54: #{tpu_custom_call.1} parent=39 // pred_check_branch
          %1500 = sbr.rel (%p1498) target = $region56
        $region55: #{tpu_custom_call.1} parent=39 // pred_region
          %v1501 = vld [vmem:[#allocation2] sm:$0xff]
          %v1502 = vld [vmem:[#allocation2 + $0x38] sm:$0xff]
          %v1503 = vld [vmem:[#allocation2 + $0x70] sm:$0xff]
          %v1504 = vld [vmem:[#allocation2 + $0xa8] sm:$0xff]
          %v1505 = vld [vmem:[#allocation2 + $0xe0] sm:$0xff]
          %v1506 = vld [vmem:[#allocation2 + $0x118] sm:$0xff]
          %v1507 = vld [vmem:[#allocation2 + $0x150] sm:$0xff]
          %v1508 = vld [vmem:[#allocation2 + $0x188] sm:$0xff]
          %v1509 = vld [vmem:[#allocation2 + $0x1c0] sm:$0xff]
          %1510 = vadd.xlane.f32.xlu0 %v1501
          %v1511 = vpop.xlane.xlu0 %1510
          %1512 = vadd.xlane.f32.xlu0 %v1502
          %v1513 = vpop.xlane.xlu0 %1512
          %1514 = vadd.xlane.f32.xlu0 %v1503
          %v1515 = vpop.xlane.xlu0 %1514
          %1516 = vadd.xlane.f32.xlu0 %v1504
          %v1517 = vpop.xlane.xlu0 %1516
          %1518 = vadd.xlane.f32.xlu0 %v1505
          %v1519 = vpop.xlane.xlu0 %1518
          %1520 = vadd.xlane.f32.xlu0 %v1506
          %v1521 = vpop.xlane.xlu0 %1520
          %1522 = vadd.xlane.f32.xlu0 %v1507
          %v1523 = vpop.xlane.xlu0 %1522
          %1524 = vadd.xlane.f32.xlu0 %v1508
          %v1525 = vpop.xlane.xlu0 %1524
          %1526 = vadd.xlane.f32.xlu0 %v1509
          %v1527 = vpop.xlane.xlu0 %1526
          %v1528 = vadd.f32 %v1511, 0.0
          %v1529 = vadd.f32 %v1513, 0.0
          %v1530 = vadd.f32 %v1515, 0.0
          %v1531 = vadd.f32 %v1517, 0.0
          %v1532 = vadd.f32 %v1519, 0.0
          %v1533 = vadd.f32 %v1521, 0.0
          %v1534 = vadd.f32 %v1523, 0.0
          %v1535 = vadd.f32 %v1525, 0.0
          %v1536 = vadd.f32 %v1527, 0.0
          %v1537 = vmul.f32 %v1501, %v1501
          %v1538 = vmul.f32 %v1502, %v1502
          %v1539 = vmul.f32 %v1503, %v1503
          %v1540 = vmul.f32 %v1504, %v1504
          %v1541 = vmul.f32 %v1505, %v1505
          %v1542 = vmul.f32 %v1506, %v1506
          %v1543 = vmul.f32 %v1507, %v1507
          %v1544 = vmul.f32 %v1508, %v1508
          %v1545 = vmul.f32 %v1509, %v1509
          %1546 = vadd.xlane.f32.xlu0 %v1537
          %v1547 = vpop.xlane.xlu0 %1546
          %1548 = vadd.xlane.f32.xlu0 %v1538
          %v1549 = vpop.xlane.xlu0 %1548
          %1550 = vadd.xlane.f32.xlu0 %v1539
          %v1551 = vpop.xlane.xlu0 %1550
          %1552 = vadd.xlane.f32.xlu0 %v1540
          %v1553 = vpop.xlane.xlu0 %1552
          %1554 = vadd.xlane.f32.xlu0 %v1541
          %v1555 = vpop.xlane.xlu0 %1554
          %1556 = vadd.xlane.f32.xlu0 %v1542
          %v1557 = vpop.xlane.xlu0 %1556
          %1558 = vadd.xlane.f32.xlu0 %v1543
          %v1559 = vpop.xlane.xlu0 %1558
          %1560 = vadd.xlane.f32.xlu0 %v1544
          %v1561 = vpop.xlane.xlu0 %1560
          %1562 = vadd.xlane.f32.xlu0 %v1545
          %v1563 = vpop.xlane.xlu0 %1562
          %v1564 = vadd.f32 %v1547, 0.0
          %v1565 = vadd.f32 %v1549, 0.0
          %v1566 = vadd.f32 %v1551, 0.0
          %v1567 = vadd.f32 %v1553, 0.0
          %v1568 = vadd.f32 %v1555, 0.0
          %v1569 = vadd.f32 %v1557, 0.0
          %v1570 = vadd.f32 %v1559, 0.0
          %v1571 = vadd.f32 %v1561, 0.0
          %v1572 = vadd.f32 %v1563, 0.0
          %v1573 = vld [vmem:[#allocation2 + $0x8] sm:$0xff]
          %v1574 = vld [vmem:[#allocation2 + $0x40] sm:$0xff]
          %v1575 = vld [vmem:[#allocation2 + $0x78] sm:$0xff]
          %v1576 = vld [vmem:[#allocation2 + $0xb0] sm:$0xff]
          %v1577 = vld [vmem:[#allocation2 + $0xe8] sm:$0xff]
          %v1578 = vld [vmem:[#allocation2 + $0x120] sm:$0xff]
          %v1579 = vld [vmem:[#allocation2 + $0x158] sm:$0xff]
          %v1580 = vld [vmem:[#allocation2 + $0x190] sm:$0xff]
          %v1581 = vld [vmem:[#allocation2 + $0x1c8] sm:$0xff]
          %1582 = vadd.xlane.f32.xlu0 %v1573
          %v1583 = vpop.xlane.xlu0 %1582
          %1584 = vadd.xlane.f32.xlu0 %v1574
          %v1585 = vpop.xlane.xlu0 %1584
          %1586 = vadd.xlane.f32.xlu0 %v1575
          %v1587 = vpop.xlane.xlu0 %1586
          %1588 = vadd.xlane.f32.xlu0 %v1576
          %v1589 = vpop.xlane.xlu0 %1588
          %1590 = vadd.xlane.f32.xlu0 %v1577
          %v1591 = vpop.xlane.xlu0 %1590
          %1592 = vadd.xlane.f32.xlu0 %v1578
          %v1593 = vpop.xlane.xlu0 %1592
          %1594 = vadd.xlane.f32.xlu0 %v1579
          %v1595 = vpop.xlane.xlu0 %1594
          %1596 = vadd.xlane.f32.xlu0 %v1580
          %v1597 = vpop.xlane.xlu0 %1596
          %1598 = vadd.xlane.f32.xlu0 %v1581
          %v1599 = vpop.xlane.xlu0 %1598
          %v1600 = vadd.f32 %v1528, %v1583
          %v1601 = vadd.f32 %v1529, %v1585
          %v1602 = vadd.f32 %v1530, %v1587
          %v1603 = vadd.f32 %v1531, %v1589
          %v1604 = vadd.f32 %v1532, %v1591
          %v1605 = vadd.f32 %v1533, %v1593
          %v1606 = vadd.f32 %v1534, %v1595
          %v1607 = vadd.f32 %v1535, %v1597
          %v1608 = vadd.f32 %v1536, %v1599
          %v1609 = vmul.f32 %v1573, %v1573
          %v1610 = vmul.f32 %v1574, %v1574
          %v1611 = vmul.f32 %v1575, %v1575
          %v1612 = vmul.f32 %v1576, %v1576
          %v1613 = vmul.f32 %v1577, %v1577
          %v1614 = vmul.f32 %v1578, %v1578
          %v1615 = vmul.f32 %v1579, %v1579
          %v1616 = vmul.f32 %v1580, %v1580
          %v1617 = vmul.f32 %v1581, %v1581
          %1618 = vadd.xlane.f32.xlu0 %v1609
          %v1619 = vpop.xlane.xlu0 %1618
          %1620 = vadd.xlane.f32.xlu0 %v1610
          %v1621 = vpop.xlane.xlu0 %1620
          %1622 = vadd.xlane.f32.xlu0 %v1611
          %v1623 = vpop.xlane.xlu0 %1622
          %1624 = vadd.xlane.f32.xlu0 %v1612
          %v1625 = vpop.xlane.xlu0 %1624
          %1626 = vadd.xlane.f32.xlu0 %v1613
          %v1627 = vpop.xlane.xlu0 %1626
          %1628 = vadd.xlane.f32.xlu0 %v1614
          %v1629 = vpop.xlane.xlu0 %1628
          %1630 = vadd.xlane.f32.xlu0 %v1615
          %v1631 = vpop.xlane.xlu0 %1630
          %1632 = vadd.xlane.f32.xlu0 %v1616
          %v1633 = vpop.xlane.xlu0 %1632
          %1634 = vadd.xlane.f32.xlu0 %v1617
          %v1635 = vpop.xlane.xlu0 %1634
          %v1636 = vadd.f32 %v1564, %v1619
          %v1637 = vadd.f32 %v1565, %v1621
          %v1638 = vadd.f32 %v1566, %v1623
          %v1639 = vadd.f32 %v1567, %v1625
          %v1640 = vadd.f32 %v1568, %v1627
          %v1641 = vadd.f32 %v1569, %v1629
          %v1642 = vadd.f32 %v1570, %v1631
          %v1643 = vadd.f32 %v1571, %v1633
          %v1644 = vadd.f32 %v1572, %v1635
          %v1645 = vld [vmem:[#allocation2 + $0x10] sm:$0xff]
          %v1646 = vld [vmem:[#allocation2 + $0x48] sm:$0xff]
          %v1647 = vld [vmem:[#allocation2 + $0x80] sm:$0xff]
          %v1648 = vld [vmem:[#allocation2 + $0xb8] sm:$0xff]
          %v1649 = vld [vmem:[#allocation2 + $0xf0] sm:$0xff]
          %v1650 = vld [vmem:[#allocation2 + $0x128] sm:$0xff]
          %v1651 = vld [vmem:[#allocation2 + $0x160] sm:$0xff]
          %v1652 = vld [vmem:[#allocation2 + $0x198] sm:$0xff]
          %v1653 = vld [vmem:[#allocation2 + $0x1d0] sm:$0xff]
          %1654 = vadd.xlane.f32.xlu0 %v1645
          %v1655 = vpop.xlane.xlu0 %1654
          %1656 = vadd.xlane.f32.xlu0 %v1646
          %v1657 = vpop.xlane.xlu0 %1656
          %1658 = vadd.xlane.f32.xlu0 %v1647
          %v1659 = vpop.xlane.xlu0 %1658
          %1660 = vadd.xlane.f32.xlu0 %v1648
          %v1661 = vpop.xlane.xlu0 %1660
          %1662 = vadd.xlane.f32.xlu0 %v1649
          %v1663 = vpop.xlane.xlu0 %1662
          %1664 = vadd.xlane.f32.xlu0 %v1650
          %v1665 = vpop.xlane.xlu0 %1664
          %1666 = vadd.xlane.f32.xlu0 %v1651
          %v1667 = vpop.xlane.xlu0 %1666
          %1668 = vadd.xlane.f32.xlu0 %v1652
          %v1669 = vpop.xlane.xlu0 %1668
          %1670 = vadd.xlane.f32.xlu0 %v1653
          %v1671 = vpop.xlane.xlu0 %1670
          %v1672 = vadd.f32 %v1600, %v1655
          %v1673 = vadd.f32 %v1601, %v1657
          %v1674 = vadd.f32 %v1602, %v1659
          %v1675 = vadd.f32 %v1603, %v1661
          %v1676 = vadd.f32 %v1604, %v1663
          %v1677 = vadd.f32 %v1605, %v1665
          %v1678 = vadd.f32 %v1606, %v1667
          %v1679 = vadd.f32 %v1607, %v1669
          %v1680 = vadd.f32 %v1608, %v1671
          %v1681 = vmul.f32 %v1645, %v1645
          %v1682 = vmul.f32 %v1646, %v1646
          %v1683 = vmul.f32 %v1647, %v1647
          %v1684 = vmul.f32 %v1648, %v1648
          %v1685 = vmul.f32 %v1649, %v1649
          %v1686 = vmul.f32 %v1650, %v1650
          %v1687 = vmul.f32 %v1651, %v1651
          %v1688 = vmul.f32 %v1652, %v1652
          %v1689 = vmul.f32 %v1653, %v1653
          %1690 = vadd.xlane.f32.xlu0 %v1681
          %v1691 = vpop.xlane.xlu0 %1690
          %1692 = vadd.xlane.f32.xlu0 %v1682
          %v1693 = vpop.xlane.xlu0 %1692
          %1694 = vadd.xlane.f32.xlu0 %v1683
          %v1695 = vpop.xlane.xlu0 %1694
          %1696 = vadd.xlane.f32.xlu0 %v1684
          %v1697 = vpop.xlane.xlu0 %1696
          %1698 = vadd.xlane.f32.xlu0 %v1685
          %v1699 = vpop.xlane.xlu0 %1698
          %1700 = vadd.xlane.f32.xlu0 %v1686
          %v1701 = vpop.xlane.xlu0 %1700
          %1702 = vadd.xlane.f32.xlu0 %v1687
          %v1703 = vpop.xlane.xlu0 %1702
          %1704 = vadd.xlane.f32.xlu0 %v1688
          %v1705 = vpop.xlane.xlu0 %1704
          %1706 = vadd.xlane.f32.xlu0 %v1689
          %v1707 = vpop.xlane.xlu0 %1706
          %v1708 = vadd.f32 %v1636, %v1691
          %v1709 = vadd.f32 %v1637, %v1693
          %v1710 = vadd.f32 %v1638, %v1695
          %v1711 = vadd.f32 %v1639, %v1697
          %v1712 = vadd.f32 %v1640, %v1699
          %v1713 = vadd.f32 %v1641, %v1701
          %v1714 = vadd.f32 %v1642, %v1703
          %v1715 = vadd.f32 %v1643, %v1705
          %v1716 = vadd.f32 %v1644, %v1707
          %v1717 = vld [vmem:[#allocation2 + $0x18] sm:$0xff]
          %v1718 = vld [vmem:[#allocation2 + $0x50] sm:$0xff]
          %v1719 = vld [vmem:[#allocation2 + $0x88] sm:$0xff]
          %v1720 = vld [vmem:[#allocation2 + $0xc0] sm:$0xff]
          %v1721 = vld [vmem:[#allocation2 + $0xf8] sm:$0xff]
          %v1722 = vld [vmem:[#allocation2 + $0x130] sm:$0xff]
          %v1723 = vld [vmem:[#allocation2 + $0x168] sm:$0xff]
          %v1724 = vld [vmem:[#allocation2 + $0x1a0] sm:$0xff]
          %v1725 = vld [vmem:[#allocation2 + $0x1d8] sm:$0xff]
          %1726 = vadd.xlane.f32.xlu0 %v1717
          %v1727 = vpop.xlane.xlu0 %1726
          %1728 = vadd.xlane.f32.xlu0 %v1718
          %v1729 = vpop.xlane.xlu0 %1728
          %1730 = vadd.xlane.f32.xlu0 %v1719
          %v1731 = vpop.xlane.xlu0 %1730
          %1732 = vadd.xlane.f32.xlu0 %v1720
          %v1733 = vpop.xlane.xlu0 %1732
          %1734 = vadd.xlane.f32.xlu0 %v1721
          %v1735 = vpop.xlane.xlu0 %1734
          %1736 = vadd.xlane.f32.xlu0 %v1722
          %v1737 = vpop.xlane.xlu0 %1736
          %1738 = vadd.xlane.f32.xlu0 %v1723
          %v1739 = vpop.xlane.xlu0 %1738
          %1740 = vadd.xlane.f32.xlu0 %v1724
          %v1741 = vpop.xlane.xlu0 %1740
          %1742 = vadd.xlane.f32.xlu0 %v1725
          %v1743 = vpop.xlane.xlu0 %1742
          %v1744 = vadd.f32 %v1672, %v1727
          %v1745 = vadd.f32 %v1673, %v1729
          %v1746 = vadd.f32 %v1674, %v1731
          %v1747 = vadd.f32 %v1675, %v1733
          %v1748 = vadd.f32 %v1676, %v1735
          %v1749 = vadd.f32 %v1677, %v1737
          %v1750 = vadd.f32 %v1678, %v1739
          %v1751 = vadd.f32 %v1679, %v1741
          %v1752 = vadd.f32 %v1680, %v1743
          %v1753 = vmul.f32 %v1717, %v1717
          %v1754 = vmul.f32 %v1718, %v1718
          %v1755 = vmul.f32 %v1719, %v1719
          %v1756 = vmul.f32 %v1720, %v1720
          %v1757 = vmul.f32 %v1721, %v1721
          %v1758 = vmul.f32 %v1722, %v1722
          %v1759 = vmul.f32 %v1723, %v1723
          %v1760 = vmul.f32 %v1724, %v1724
          %v1761 = vmul.f32 %v1725, %v1725
          %1762 = vadd.xlane.f32.xlu0 %v1753
          %v1763 = vpop.xlane.xlu0 %1762
          %1764 = vadd.xlane.f32.xlu0 %v1754
          %v1765 = vpop.xlane.xlu0 %1764
          %1766 = vadd.xlane.f32.xlu0 %v1755
          %v1767 = vpop.xlane.xlu0 %1766
          %1768 = vadd.xlane.f32.xlu0 %v1756
          %v1769 = vpop.xlane.xlu0 %1768
          %1770 = vadd.xlane.f32.xlu0 %v1757
          %v1771 = vpop.xlane.xlu0 %1770
          %1772 = vadd.xlane.f32.xlu0 %v1758
          %v1773 = vpop.xlane.xlu0 %1772
          %1774 = vadd.xlane.f32.xlu0 %v1759
          %v1775 = vpop.xlane.xlu0 %1774
          %1776 = vadd.xlane.f32.xlu0 %v1760
          %v1777 = vpop.xlane.xlu0 %1776
          %1778 = vadd.xlane.f32.xlu0 %v1761
          %v1779 = vpop.xlane.xlu0 %1778
          %v1780 = vadd.f32 %v1708, %v1763
          %v1781 = vadd.f32 %v1709, %v1765
          %v1782 = vadd.f32 %v1710, %v1767
          %v1783 = vadd.f32 %v1711, %v1769
          %v1784 = vadd.f32 %v1712, %v1771
          %v1785 = vadd.f32 %v1713, %v1773
          %v1786 = vadd.f32 %v1714, %v1775
          %v1787 = vadd.f32 %v1715, %v1777
          %v1788 = vadd.f32 %v1716, %v1779
          %v1789 = vld [vmem:[#allocation2 + $0x20] sm:$0xff]
          %v1790 = vld [vmem:[#allocation2 + $0x58] sm:$0xff]
          %v1791 = vld [vmem:[#allocation2 + $0x90] sm:$0xff]
          %v1792 = vld [vmem:[#allocation2 + $0xc8] sm:$0xff]
          %v1793 = vld [vmem:[#allocation2 + $0x100] sm:$0xff]
          %v1794 = vld [vmem:[#allocation2 + $0x138] sm:$0xff]
          %v1795 = vld [vmem:[#allocation2 + $0x170] sm:$0xff]
          %v1796 = vld [vmem:[#allocation2 + $0x1a8] sm:$0xff]
          %v1797 = vld [vmem:[#allocation2 + $0x1e0] sm:$0xff]
          %1798 = vadd.xlane.f32.xlu0 %v1789
          %v1799 = vpop.xlane.xlu0 %1798
          %1800 = vadd.xlane.f32.xlu0 %v1790
          %v1801 = vpop.xlane.xlu0 %1800
          %1802 = vadd.xlane.f32.xlu0 %v1791
          %v1803 = vpop.xlane.xlu0 %1802
          %1804 = vadd.xlane.f32.xlu0 %v1792
          %v1805 = vpop.xlane.xlu0 %1804
          %1806 = vadd.xlane.f32.xlu0 %v1793
          %v1807 = vpop.xlane.xlu0 %1806
          %1808 = vadd.xlane.f32.xlu0 %v1794
          %v1809 = vpop.xlane.xlu0 %1808
          %1810 = vadd.xlane.f32.xlu0 %v1795
          %v1811 = vpop.xlane.xlu0 %1810
          %1812 = vadd.xlane.f32.xlu0 %v1796
          %v1813 = vpop.xlane.xlu0 %1812
          %1814 = vadd.xlane.f32.xlu0 %v1797
          %v1815 = vpop.xlane.xlu0 %1814
          %v1816 = vadd.f32 %v1744, %v1799
          %v1817 = vadd.f32 %v1745, %v1801
          %v1818 = vadd.f32 %v1746, %v1803
          %v1819 = vadd.f32 %v1747, %v1805
          %v1820 = vadd.f32 %v1748, %v1807
          %v1821 = vadd.f32 %v1749, %v1809
          %v1822 = vadd.f32 %v1750, %v1811
          %v1823 = vadd.f32 %v1751, %v1813
          %v1824 = vadd.f32 %v1752, %v1815
          %v1825 = vmul.f32 %v1789, %v1789
          %v1826 = vmul.f32 %v1790, %v1790
          %v1827 = vmul.f32 %v1791, %v1791
          %v1828 = vmul.f32 %v1792, %v1792
          %v1829 = vmul.f32 %v1793, %v1793
          %v1830 = vmul.f32 %v1794, %v1794
          %v1831 = vmul.f32 %v1795, %v1795
          %v1832 = vmul.f32 %v1796, %v1796
          %v1833 = vmul.f32 %v1797, %v1797
          %1834 = vadd.xlane.f32.xlu0 %v1825
          %v1835 = vpop.xlane.xlu0 %1834
          %1836 = vadd.xlane.f32.xlu0 %v1826
          %v1837 = vpop.xlane.xlu0 %1836
          %1838 = vadd.xlane.f32.xlu0 %v1827
          %v1839 = vpop.xlane.xlu0 %1838
          %1840 = vadd.xlane.f32.xlu0 %v1828
          %v1841 = vpop.xlane.xlu0 %1840
          %1842 = vadd.xlane.f32.xlu0 %v1829
          %v1843 = vpop.xlane.xlu0 %1842
          %1844 = vadd.xlane.f32.xlu0 %v1830
          %v1845 = vpop.xlane.xlu0 %1844
          %1846 = vadd.xlane.f32.xlu0 %v1831
          %v1847 = vpop.xlane.xlu0 %1846
          %1848 = vadd.xlane.f32.xlu0 %v1832
          %v1849 = vpop.xlane.xlu0 %1848
          %1850 = vadd.xlane.f32.xlu0 %v1833
          %v1851 = vpop.xlane.xlu0 %1850
          %v1852 = vadd.f32 %v1780, %v1835
          %v1853 = vadd.f32 %v1781, %v1837
          %v1854 = vadd.f32 %v1782, %v1839
          %v1855 = vadd.f32 %v1783, %v1841
          %v1856 = vadd.f32 %v1784, %v1843
          %v1857 = vadd.f32 %v1785, %v1845
          %v1858 = vadd.f32 %v1786, %v1847
          %v1859 = vadd.f32 %v1787, %v1849
          %v1860 = vadd.f32 %v1788, %v1851
          %v1861 = vld [vmem:[#allocation2 + $0x28] sm:$0xff]
          %v1862 = vld [vmem:[#allocation2 + $0x60] sm:$0xff]
          %v1863 = vld [vmem:[#allocation2 + $0x98] sm:$0xff]
          %v1864 = vld [vmem:[#allocation2 + $0xd0] sm:$0xff]
          %v1865 = vld [vmem:[#allocation2 + $0x108] sm:$0xff]
          %v1866 = vld [vmem:[#allocation2 + $0x140] sm:$0xff]
          %v1867 = vld [vmem:[#allocation2 + $0x178] sm:$0xff]
          %v1868 = vld [vmem:[#allocation2 + $0x1b0] sm:$0xff]
          %v1869 = vld [vmem:[#allocation2 + $0x1e8] sm:$0xff]
          %1870 = vadd.xlane.f32.xlu0 %v1861
          %v1871 = vpop.xlane.xlu0 %1870
          %1872 = vadd.xlane.f32.xlu0 %v1862
          %v1873 = vpop.xlane.xlu0 %1872
          %1874 = vadd.xlane.f32.xlu0 %v1863
          %v1875 = vpop.xlane.xlu0 %1874
          %1876 = vadd.xlane.f32.xlu0 %v1864
          %v1877 = vpop.xlane.xlu0 %1876
          %1878 = vadd.xlane.f32.xlu0 %v1865
          %v1879 = vpop.xlane.xlu0 %1878
          %1880 = vadd.xlane.f32.xlu0 %v1866
          %v1881 = vpop.xlane.xlu0 %1880
          %1882 = vadd.xlane.f32.xlu0 %v1867
          %v1883 = vpop.xlane.xlu0 %1882
          %1884 = vadd.xlane.f32.xlu0 %v1868
          %v1885 = vpop.xlane.xlu0 %1884
          %1886 = vadd.xlane.f32.xlu0 %v1869
          %v1887 = vpop.xlane.xlu0 %1886
          %v1888 = vadd.f32 %v1816, %v1871
          %v1889 = vadd.f32 %v1817, %v1873
          %v1890 = vadd.f32 %v1818, %v1875
          %v1891 = vadd.f32 %v1819, %v1877
          %v1892 = vadd.f32 %v1820, %v1879
          %v1893 = vadd.f32 %v1821, %v1881
          %v1894 = vadd.f32 %v1822, %v1883
          %v1895 = vadd.f32 %v1823, %v1885
          %v1896 = vadd.f32 %v1824, %v1887
          %v1897 = vmul.f32 %v1861, %v1861
          %v1898 = vmul.f32 %v1862, %v1862
          %v1899 = vmul.f32 %v1863, %v1863
          %v1900 = vmul.f32 %v1864, %v1864
          %v1901 = vmul.f32 %v1865, %v1865
          %v1902 = vmul.f32 %v1866, %v1866
          %v1903 = vmul.f32 %v1867, %v1867
          %v1904 = vmul.f32 %v1868, %v1868
          %v1905 = vmul.f32 %v1869, %v1869
          %1906 = vadd.xlane.f32.xlu0 %v1897
          %v1907 = vpop.xlane.xlu0 %1906
          %1908 = vadd.xlane.f32.xlu0 %v1898
          %v1909 = vpop.xlane.xlu0 %1908
          %1910 = vadd.xlane.f32.xlu0 %v1899
          %v1911 = vpop.xlane.xlu0 %1910
          %1912 = vadd.xlane.f32.xlu0 %v1900
          %v1913 = vpop.xlane.xlu0 %1912
          %1914 = vadd.xlane.f32.xlu0 %v1901
          %v1915 = vpop.xlane.xlu0 %1914
          %1916 = vadd.xlane.f32.xlu0 %v1902
          %v1917 = vpop.xlane.xlu0 %1916
          %1918 = vadd.xlane.f32.xlu0 %v1903
          %v1919 = vpop.xlane.xlu0 %1918
          %1920 = vadd.xlane.f32.xlu0 %v1904
          %v1921 = vpop.xlane.xlu0 %1920
          %1922 = vadd.xlane.f32.xlu0 %v1905
          %v1923 = vpop.xlane.xlu0 %1922
          %v1924 = vadd.f32 %v1852, %v1907
          %v1925 = vadd.f32 %v1853, %v1909
          %v1926 = vadd.f32 %v1854, %v1911
          %v1927 = vadd.f32 %v1855, %v1913
          %v1928 = vadd.f32 %v1856, %v1915
          %v1929 = vadd.f32 %v1857, %v1917
          %v1930 = vadd.f32 %v1858, %v1919
          %v1931 = vadd.f32 %v1859, %v1921
          %v1932 = vadd.f32 %v1860, %v1923
          %v1933 = vld [vmem:[#allocation2 + $0x30] sm:$0xff]
          %v1934 = vld [vmem:[#allocation2 + $0x68] sm:$0xff]
          %v1935 = vld [vmem:[#allocation2 + $0xa0] sm:$0xff]
          %v1936 = vld [vmem:[#allocation2 + $0xd8] sm:$0xff]
          %v1937 = vld [vmem:[#allocation2 + $0x110] sm:$0xff]
          %v1938 = vld [vmem:[#allocation2 + $0x148] sm:$0xff]
          %v1939 = vld [vmem:[#allocation2 + $0x180] sm:$0xff]
          %v1940 = vld [vmem:[#allocation2 + $0x1b8] sm:$0xff]
          %v1941 = vld [vmem:[#allocation2 + $0x1f0] sm:$0xff]
          %v1942 = vsel %vm893, %v1933, 0.0
          %1943 = vadd.xlane.f32.xlu0 %v1942
          %v1944 = vpop.xlane.xlu0 %1943
          %v1945 = vsel %vm893, %v1934, 0.0
          %1946 = vadd.xlane.f32.xlu0 %v1945
          %v1947 = vpop.xlane.xlu0 %1946
          %v1948 = vsel %vm893, %v1935, 0.0
          %1949 = vadd.xlane.f32.xlu0 %v1948
          %v1950 = vpop.xlane.xlu0 %1949
          %v1951 = vsel %vm893, %v1936, 0.0
          %1952 = vadd.xlane.f32.xlu0 %v1951
          %v1953 = vpop.xlane.xlu0 %1952
          %v1954 = vsel %vm893, %v1937, 0.0
          %1955 = vadd.xlane.f32.xlu0 %v1954
          %v1956 = vpop.xlane.xlu0 %1955
          %v1957 = vsel %vm893, %v1938, 0.0
          %1958 = vadd.xlane.f32.xlu0 %v1957
          %v1959 = vpop.xlane.xlu0 %1958
          %v1960 = vsel %vm893, %v1939, 0.0
          %1961 = vadd.xlane.f32.xlu0 %v1960
          %v1962 = vpop.xlane.xlu0 %1961
          %v1963 = vsel %vm893, %v1940, 0.0
          %1964 = vadd.xlane.f32.xlu0 %v1963
          %v1965 = vpop.xlane.xlu0 %1964
          %v1966 = vsel %vm893, %v1941, 0.0
          %1967 = vadd.xlane.f32.xlu0 %v1966
          %v1968 = vpop.xlane.xlu0 %1967
          %v1969 = vadd.f32 %v1888, %v1944
          %v1970 = vadd.f32 %v1889, %v1947
          %v1971 = vadd.f32 %v1890, %v1950
          %v1972 = vadd.f32 %v1891, %v1953
          %v1973 = vadd.f32 %v1892, %v1956
          %v1974 = vadd.f32 %v1893, %v1959
          %v1975 = vadd.f32 %v1894, %v1962
          %v1976 = vadd.f32 %v1895, %v1965
          %v1977 = vadd.f32 %v1896, %v1968
          %v1978 = vmul.f32 %v1933, %v1933
          %v1979 = vmul.f32 %v1934, %v1934
          %v1980 = vmul.f32 %v1935, %v1935
          %v1981 = vmul.f32 %v1936, %v1936
          %v1982 = vmul.f32 %v1937, %v1937
          %v1983 = vmul.f32 %v1938, %v1938
          %v1984 = vmul.f32 %v1939, %v1939
          %v1985 = vmul.f32 %v1940, %v1940
          %v1986 = vmul.f32 %v1941, %v1941
          %v1987 = vsel %vm893, %v1978, 0.0
          %1988 = vadd.xlane.f32.xlu0 %v1987
          %v1989 = vpop.xlane.xlu0 %1988
          %v1990 = vsel %vm893, %v1979, 0.0
          %1991 = vadd.xlane.f32.xlu0 %v1990
          %v1992 = vpop.xlane.xlu0 %1991
          %v1993 = vsel %vm893, %v1980, 0.0
          %1994 = vadd.xlane.f32.xlu0 %v1993
          %v1995 = vpop.xlane.xlu0 %1994
          %v1996 = vsel %vm893, %v1981, 0.0
          %1997 = vadd.xlane.f32.xlu0 %v1996
          %v1998 = vpop.xlane.xlu0 %1997
          %v1999 = vsel %vm893, %v1982, 0.0
          %2000 = vadd.xlane.f32.xlu0 %v1999
          %v2001 = vpop.xlane.xlu0 %2000
          %v2002 = vsel %vm893, %v1983, 0.0
          %2003 = vadd.xlane.f32.xlu0 %v2002
          %v2004 = vpop.xlane.xlu0 %2003
          %v2005 = vsel %vm893, %v1984, 0.0
          %2006 = vadd.xlane.f32.xlu0 %v2005
          %v2007 = vpop.xlane.xlu0 %2006
          %v2008 = vsel %vm893, %v1985, 0.0
          %2009 = vadd.xlane.f32.xlu0 %v2008
          %v2010 = vpop.xlane.xlu0 %2009
          %v2011 = vsel %vm893, %v1986, 0.0
          %2012 = vadd.xlane.f32.xlu0 %v2011
          %v2013 = vpop.xlane.xlu0 %2012
          %v2014 = vadd.f32 %v1924, %v1989
          %v2015 = vadd.f32 %v1925, %v1992
          %v2016 = vadd.f32 %v1926, %v1995
          %v2017 = vadd.f32 %v1927, %v1998
          %v2018 = vadd.f32 %v1928, %v2001
          %v2019 = vadd.f32 %v1929, %v2004
          %v2020 = vadd.f32 %v1930, %v2007
          %v2021 = vadd.f32 %v1931, %v2010
          %v2022 = vadd.f32 %v1932, %v2013
          %v2023 = vmul.f32 %v1969, 0.0012755102
          %v2024 = vmul.f32 %v1970, 0.0012755102
          %v2025 = vmul.f32 %v1971, 0.0012755102
          %v2026 = vmul.f32 %v1972, 0.0012755102
          %v2027 = vmul.f32 %v1973, 0.0012755102
          %v2028 = vmul.f32 %v1974, 0.0012755102
          %v2029 = vmul.f32 %v1975, 0.0012755102
          %v2030 = vmul.f32 %v1976, 0.0012755102
          %v2031 = vmul.f32 %v1977, 0.0012755102
          %v2032 = vmul.f32 %v2014, 0.0012755102
          %v2033 = vmul.f32 %v2015, 0.0012755102
          %v2034 = vmul.f32 %v2016, 0.0012755102
          %v2035 = vmul.f32 %v2017, 0.0012755102
          %v2036 = vmul.f32 %v2018, 0.0012755102
          %v2037 = vmul.f32 %v2019, 0.0012755102
          %v2038 = vmul.f32 %v2020, 0.0012755102
          %v2039 = vmul.f32 %v2021, 0.0012755102
          %v2040 = vmul.f32 %v2022, 0.0012755102
          %v2041 = vmul.f32 %v2023, %v2023
          %v2042 = vmul.f32 %v2024, %v2024
          %v2043 = vmul.f32 %v2025, %v2025
          %v2044 = vmul.f32 %v2026, %v2026
          %v2045 = vmul.f32 %v2027, %v2027
          %v2046 = vmul.f32 %v2028, %v2028
          %v2047 = vmul.f32 %v2029, %v2029
          %v2048 = vmul.f32 %v2030, %v2030
          %v2049 = vmul.f32 %v2031, %v2031
          %v2050 = vsub.f32 %v2032, %v2041
          %v2051 = vsub.f32 %v2033, %v2042
          %v2052 = vsub.f32 %v2034, %v2043
          %v2053 = vsub.f32 %v2035, %v2044
          %v2054 = vsub.f32 %v2036, %v2045
          %v2055 = vsub.f32 %v2037, %v2046
          %v2056 = vsub.f32 %v2038, %v2047
          %v2057 = vsub.f32 %v2039, %v2048
          %v2058 = vsub.f32 %v2040, %v2049
          %v2059 = vld [vmem:[%s3] sm:$0xff]
          %v2060 = vld [vmem:[%s3 + $0x8] sm:$0xff]
          %v2061 = vld [vmem:[%s3 + $0x10] sm:$0xff]
          %v2062 = vld [vmem:[%s3 + $0x18] sm:$0xff]
          %v2063 = vld [vmem:[%s3 + $0x20] sm:$0xff]
          %v2064 = vld [vmem:[%s3 + $0x28] sm:$0xff]
          %v2065 = vld [vmem:[%s3 + $0x30] sm:$0xff]
          %v2066 = vld [vmem:[%s3 + $0x38] sm:$0xff]
          %v2067 = vld [vmem:[%s3 + $0x40] sm:$0xff]
          %v2068 = vadd.f32 %v2050, 0.001
          %v2069 = vadd.f32 %v2051, 0.001
          %v2070 = vadd.f32 %v2052, 0.001
          %v2071 = vadd.f32 %v2053, 0.001
          %v2072 = vadd.f32 %v2054, 0.001
          %v2073 = vadd.f32 %v2055, 0.001
          %v2074 = vadd.f32 %v2056, 0.001
          %v2075 = vadd.f32 %v2057, 0.001
          %v2076 = vadd.f32 %v2058, 0.001
          %v2077 = vrsqrt.pop %v2068
          %v2078 = vmul.f32 %v2077, %v2068
          %v2079 = vmul.f32 %v2078, %v2077
          %v2080 = vmul.f32 0.5, %v2079
          %v2081 = vsub.f32 1.5, %v2080
          %v2082 = vmul.f32 %v2077, %v2081
          %vm2083 = vweird.f32 %v2068
          %vm2084 = vweird.f32 %v2077
          %vm2085 = vmor %vm2083, %vm2084
          %v2086 = vsel %vm2085, %v2077, %v2082
          %v2087 = vrsqrt.pop %v2069
          %v2088 = vmul.f32 %v2087, %v2069
          %v2089 = vmul.f32 %v2088, %v2087
          %v2090 = vmul.f32 0.5, %v2089
          %v2091 = vsub.f32 1.5, %v2090
          %v2092 = vmul.f32 %v2087, %v2091
          %vm2093 = vweird.f32 %v2069
          %vm2094 = vweird.f32 %v2087
          %vm2095 = vmor %vm2093, %vm2094
          %v2096 = vsel %vm2095, %v2087, %v2092
          %v2097 = vrsqrt.pop %v2070
          %v2098 = vmul.f32 %v2097, %v2070
          %v2099 = vmul.f32 %v2098, %v2097
          %v2100 = vmul.f32 0.5, %v2099
          %v2101 = vsub.f32 1.5, %v2100
          %v2102 = vmul.f32 %v2097, %v2101
          %vm2103 = vweird.f32 %v2070
          %vm2104 = vweird.f32 %v2097
          %vm2105 = vmor %vm2103, %vm2104
          %v2106 = vsel %vm2105, %v2097, %v2102
          %v2107 = vrsqrt.pop %v2071
          %v2108 = vmul.f32 %v2107, %v2071
          %v2109 = vmul.f32 %v2108, %v2107
          %v2110 = vmul.f32 0.5, %v2109
          %v2111 = vsub.f32 1.5, %v2110
          %v2112 = vmul.f32 %v2107, %v2111
          %vm2113 = vweird.f32 %v2071
          %vm2114 = vweird.f32 %v2107
          %vm2115 = vmor %vm2113, %vm2114
          %v2116 = vsel %vm2115, %v2107, %v2112
          %v2117 = vrsqrt.pop %v2072
          %v2118 = vmul.f32 %v2117, %v2072
          %v2119 = vmul.f32 %v2118, %v2117
          %v2120 = vmul.f32 0.5, %v2119
          %v2121 = vsub.f32 1.5, %v2120
          %v2122 = vmul.f32 %v2117, %v2121
          %vm2123 = vweird.f32 %v2072
          %vm2124 = vweird.f32 %v2117
          %vm2125 = vmor %vm2123, %vm2124
          %v2126 = vsel %vm2125, %v2117, %v2122
          %v2127 = vrsqrt.pop %v2073
          %v2128 = vmul.f32 %v2127, %v2073
          %v2129 = vmul.f32 %v2128, %v2127
          %v2130 = vmul.f32 0.5, %v2129
          %v2131 = vsub.f32 1.5, %v2130
          %v2132 = vmul.f32 %v2127, %v2131
          %vm2133 = vweird.f32 %v2073
          %vm2134 = vweird.f32 %v2127
          %vm2135 = vmor %vm2133, %vm2134
          %v2136 = vsel %vm2135, %v2127, %v2132
          %v2137 = vrsqrt.pop %v2074
          %v2138 = vmul.f32 %v2137, %v2074
          %v2139 = vmul.f32 %v2138, %v2137
          %v2140 = vmul.f32 0.5, %v2139
          %v2141 = vsub.f32 1.5, %v2140
          %v2142 = vmul.f32 %v2137, %v2141
          %vm2143 = vweird.f32 %v2074
          %vm2144 = vweird.f32 %v2137
          %vm2145 = vmor %vm2143, %vm2144
          %v2146 = vsel %vm2145, %v2137, %v2142
          %v2147 = vrsqrt.pop %v2075
          %v2148 = vmul.f32 %v2147, %v2075
          %v2149 = vmul.f32 %v2148, %v2147
          %v2150 = vmul.f32 0.5, %v2149
          %v2151 = vsub.f32 1.5, %v2150
          %v2152 = vmul.f32 %v2147, %v2151
          %vm2153 = vweird.f32 %v2075
          %vm2154 = vweird.f32 %v2147
          %vm2155 = vmor %vm2153, %vm2154
          %v2156 = vsel %vm2155, %v2147, %v2152
          %v2157 = vrsqrt.pop %v2076
          %v2158 = vmul.f32 %v2157, %v2076
          %v2159 = vmul.f32 %v2158, %v2157
          %v2160 = vmul.f32 0.5, %v2159
          %v2161 = vsub.f32 1.5, %v2160
          %v2162 = vmul.f32 %v2157, %v2161
          %vm2163 = vweird.f32 %v2076
          %vm2164 = vweird.f32 %v2157
          %vm2165 = vmor %vm2163, %vm2164
          %v2166 = vsel %vm2165, %v2157, %v2162
          %v2167 = vmul.f32 %v2059, %v2086
          %v2168 = vmul.f32 %v2060, %v2096
          %v2169 = vmul.f32 %v2061, %v2106
          %v2170 = vmul.f32 %v2062, %v2116
          %v2171 = vmul.f32 %v2063, %v2126
          %v2172 = vmul.f32 %v2064, %v2136
          %v2173 = vmul.f32 %v2065, %v2146
          %v2174 = vmul.f32 %v2066, %v2156
          %v2175 = vmul.f32 %v2067, %v2166
          %v2176 = vld [vmem:[%s4] sm:$0xff]
          %v2177 = vld [vmem:[%s4 + $0x8] sm:$0xff]
          %v2178 = vld [vmem:[%s4 + $0x10] sm:$0xff]
          %v2179 = vld [vmem:[%s4 + $0x18] sm:$0xff]
          %v2180 = vld [vmem:[%s4 + $0x20] sm:$0xff]
          %v2181 = vld [vmem:[%s4 + $0x28] sm:$0xff]
          %v2182 = vld [vmem:[%s4 + $0x30] sm:$0xff]
          %v2183 = vld [vmem:[%s4 + $0x38] sm:$0xff]
          %v2184 = vld [vmem:[%s4 + $0x40] sm:$0xff]
          %v2185 = vmul.f32 %v2023, %v2167
          %v2186 = vmul.f32 %v2024, %v2168
          %v2187 = vmul.f32 %v2025, %v2169
          %v2188 = vmul.f32 %v2026, %v2170
          %v2189 = vmul.f32 %v2027, %v2171
          %v2190 = vmul.f32 %v2028, %v2172
          %v2191 = vmul.f32 %v2029, %v2173
          %v2192 = vmul.f32 %v2030, %v2174
          %v2193 = vmul.f32 %v2031, %v2175
          %v2194 = vsub.f32 %v2176, %v2185
          %v2195 = vsub.f32 %v2177, %v2186
          %v2196 = vsub.f32 %v2178, %v2187
          %v2197 = vsub.f32 %v2179, %v2188
          %v2198 = vsub.f32 %v2180, %v2189
          %v2199 = vsub.f32 %v2181, %v2190
          %v2200 = vsub.f32 %v2182, %v2191
          %v2201 = vsub.f32 %v2183, %v2192
          %v2202 = vsub.f32 %v2184, %v2193
          %2204 = vset.pattern.permute.xlu0 0
          %2205 = vperm.xlu0 %2204, %v2167
          %v2206 = vpop.permute.xlu0 %2205
          %2209 = vset.pattern.permute.xlu0 0
          %2210 = vperm.xlu0 %2209, %v2168
          %v2211 = vpop.permute.xlu0 %2210
          %2214 = vset.pattern.permute.xlu0 0
          %2215 = vperm.xlu0 %2214, %v2169
          %v2216 = vpop.permute.xlu0 %2215
          %2219 = vset.pattern.permute.xlu0 0
          %2220 = vperm.xlu0 %2219, %v2170
          %v2221 = vpop.permute.xlu0 %2220
          %2224 = vset.pattern.permute.xlu0 0
          %2225 = vperm.xlu0 %2224, %v2171
          %v2226 = vpop.permute.xlu0 %2225
          %2229 = vset.pattern.permute.xlu0 0
          %2230 = vperm.xlu0 %2229, %v2172
          %v2231 = vpop.permute.xlu0 %2230
          %2234 = vset.pattern.permute.xlu0 0
          %2235 = vperm.xlu0 %2234, %v2173
          %v2236 = vpop.permute.xlu0 %2235
          %2239 = vset.pattern.permute.xlu0 0
          %2240 = vperm.xlu0 %2239, %v2174
          %v2241 = vpop.permute.xlu0 %2240
          %2244 = vset.pattern.permute.xlu0 0
          %2245 = vperm.xlu0 %2244, %v2175
          %v2246 = vpop.permute.xlu0 %2245
          %v2248 = vmul.f32 %v1501, %v2206
          %v2249 = vmul.f32 %v1573, %v2206
          %v2250 = vmul.f32 %v1645, %v2206
          %v2251 = vmul.f32 %v1717, %v2206
          %v2252 = vmul.f32 %v1789, %v2206
          %v2253 = vmul.f32 %v1861, %v2206
          %v2254 = vmul.f32 %v1933, %v2206
          %v2255 = vmul.f32 %v1502, %v2211
          %v2256 = vmul.f32 %v1574, %v2211
          %v2257 = vmul.f32 %v1646, %v2211
          %v2258 = vmul.f32 %v1718, %v2211
          %v2259 = vmul.f32 %v1790, %v2211
          %v2260 = vmul.f32 %v1862, %v2211
          %v2261 = vmul.f32 %v1934, %v2211
          %v2262 = vmul.f32 %v1503, %v2216
          %v2263 = vmul.f32 %v1575, %v2216
          %v2264 = vmul.f32 %v1647, %v2216
          %v2265 = vmul.f32 %v1719, %v2216
          %v2266 = vmul.f32 %v1791, %v2216
          %v2267 = vmul.f32 %v1863, %v2216
          %v2268 = vmul.f32 %v1935, %v2216
          %v2269 = vmul.f32 %v1504, %v2221
          %v2270 = vmul.f32 %v1576, %v2221
          %v2271 = vmul.f32 %v1648, %v2221
          %v2272 = vmul.f32 %v1720, %v2221
          %v2273 = vmul.f32 %v1792, %v2221
          %v2274 = vmul.f32 %v1864, %v2221
          %v2275 = vmul.f32 %v1936, %v2221
          %v2276 = vmul.f32 %v1505, %v2226
          %v2277 = vmul.f32 %v1577, %v2226
          %v2278 = vmul.f32 %v1649, %v2226
          %v2279 = vmul.f32 %v1721, %v2226
          %v2280 = vmul.f32 %v1793, %v2226
          %v2281 = vmul.f32 %v1865, %v2226
          %v2282 = vmul.f32 %v1937, %v2226
          %v2283 = vmul.f32 %v1506, %v2231
          %v2284 = vmul.f32 %v1578, %v2231
          %v2285 = vmul.f32 %v1650, %v2231
          %v2286 = vmul.f32 %v1722, %v2231
          %v2287 = vmul.f32 %v1794, %v2231
          %v2288 = vmul.f32 %v1866, %v2231
          %v2289 = vmul.f32 %v1938, %v2231
          %v2290 = vmul.f32 %v1507, %v2236
          %v2291 = vmul.f32 %v1579, %v2236
          %v2292 = vmul.f32 %v1651, %v2236
          %v2293 = vmul.f32 %v1723, %v2236
          %v2294 = vmul.f32 %v1795, %v2236
          %v2295 = vmul.f32 %v1867, %v2236
          %v2296 = vmul.f32 %v1939, %v2236
          %v2297 = vmul.f32 %v1508, %v2241
          %v2298 = vmul.f32 %v1580, %v2241
          %v2299 = vmul.f32 %v1652, %v2241
          %v2300 = vmul.f32 %v1724, %v2241
          %v2301 = vmul.f32 %v1796, %v2241
          %v2302 = vmul.f32 %v1868, %v2241
          %v2303 = vmul.f32 %v1940, %v2241
          %v2304 = vmul.f32 %v1509, %v2246
          %v2305 = vmul.f32 %v1581, %v2246
          %v2306 = vmul.f32 %v1653, %v2246
          %v2307 = vmul.f32 %v1725, %v2246
          %v2308 = vmul.f32 %v1797, %v2246
          %v2309 = vmul.f32 %v1869, %v2246
          %v2310 = vmul.f32 %v1941, %v2246
          %2312 = vset.pattern.permute.xlu0 0
          %2313 = vperm.xlu0 %2312, %v2194
          %v2314 = vpop.permute.xlu0 %2313
          %2317 = vset.pattern.permute.xlu0 0
          %2318 = vperm.xlu0 %2317, %v2195
          %v2319 = vpop.permute.xlu0 %2318
          %2322 = vset.pattern.permute.xlu0 0
          %2323 = vperm.xlu0 %2322, %v2196
          %v2324 = vpop.permute.xlu0 %2323
          %2327 = vset.pattern.permute.xlu0 0
          %2328 = vperm.xlu0 %2327, %v2197
          %v2329 = vpop.permute.xlu0 %2328
          %2332 = vset.pattern.permute.xlu0 0
          %2333 = vperm.xlu0 %2332, %v2198
          %v2334 = vpop.permute.xlu0 %2333
          %2337 = vset.pattern.permute.xlu0 0
          %2338 = vperm.xlu0 %2337, %v2199
          %v2339 = vpop.permute.xlu0 %2338
          %2342 = vset.pattern.permute.xlu0 0
          %2343 = vperm.xlu0 %2342, %v2200
          %v2344 = vpop.permute.xlu0 %2343
          %2347 = vset.pattern.permute.xlu0 0
          %2348 = vperm.xlu0 %2347, %v2201
          %v2349 = vpop.permute.xlu0 %2348
          %2352 = vset.pattern.permute.xlu0 0
          %2353 = vperm.xlu0 %2352, %v2202
          %v2354 = vpop.permute.xlu0 %2353
          %v2356 = vadd.f32 %v2248, %v2314
          %v2357 = vadd.f32 %v2249, %v2314
          %v2358 = vadd.f32 %v2250, %v2314
          %v2359 = vadd.f32 %v2251, %v2314
          %v2360 = vadd.f32 %v2252, %v2314
          %v2361 = vadd.f32 %v2253, %v2314
          %v2362 = vadd.f32 %v2254, %v2314
          %v2363 = vadd.f32 %v2255, %v2319
          %v2364 = vadd.f32 %v2256, %v2319
          %v2365 = vadd.f32 %v2257, %v2319
          %v2366 = vadd.f32 %v2258, %v2319
          %v2367 = vadd.f32 %v2259, %v2319
          %v2368 = vadd.f32 %v2260, %v2319
          %v2369 = vadd.f32 %v2261, %v2319
          %v2370 = vadd.f32 %v2262, %v2324
          %v2371 = vadd.f32 %v2263, %v2324
          %v2372 = vadd.f32 %v2264, %v2324
          %v2373 = vadd.f32 %v2265, %v2324
          %v2374 = vadd.f32 %v2266, %v2324
          %v2375 = vadd.f32 %v2267, %v2324
          %v2376 = vadd.f32 %v2268, %v2324
          %v2377 = vadd.f32 %v2269, %v2329
          %v2378 = vadd.f32 %v2270, %v2329
          %v2379 = vadd.f32 %v2271, %v2329
          %v2380 = vadd.f32 %v2272, %v2329
          %v2381 = vadd.f32 %v2273, %v2329
          %v2382 = vadd.f32 %v2274, %v2329
          %v2383 = vadd.f32 %v2275, %v2329
          %v2384 = vadd.f32 %v2276, %v2334
          %v2385 = vadd.f32 %v2277, %v2334
          %v2386 = vadd.f32 %v2278, %v2334
          %v2387 = vadd.f32 %v2279, %v2334
          %v2388 = vadd.f32 %v2280, %v2334
          %v2389 = vadd.f32 %v2281, %v2334
          %v2390 = vadd.f32 %v2282, %v2334
          %v2391 = vadd.f32 %v2283, %v2339
          %v2392 = vadd.f32 %v2284, %v2339
          %v2393 = vadd.f32 %v2285, %v2339
          %v2394 = vadd.f32 %v2286, %v2339
          %v2395 = vadd.f32 %v2287, %v2339
          %v2396 = vadd.f32 %v2288, %v2339
          %v2397 = vadd.f32 %v2289, %v2339
          %v2398 = vadd.f32 %v2290, %v2344
          %v2399 = vadd.f32 %v2291, %v2344
          %v2400 = vadd.f32 %v2292, %v2344
          %v2401 = vadd.f32 %v2293, %v2344
          %v2402 = vadd.f32 %v2294, %v2344
          %v2403 = vadd.f32 %v2295, %v2344
          %v2404 = vadd.f32 %v2296, %v2344
          %v2405 = vadd.f32 %v2297, %v2349
          %v2406 = vadd.f32 %v2298, %v2349
          %v2407 = vadd.f32 %v2299, %v2349
          %v2408 = vadd.f32 %v2300, %v2349
          %v2409 = vadd.f32 %v2301, %v2349
          %v2410 = vadd.f32 %v2302, %v2349
          %v2411 = vadd.f32 %v2303, %v2349
          %v2412 = vadd.f32 %v2304, %v2354
          %v2413 = vadd.f32 %v2305, %v2354
          %v2414 = vadd.f32 %v2306, %v2354
          %v2415 = vadd.f32 %v2307, %v2354
          %v2416 = vadd.f32 %v2308, %v2354
          %v2417 = vadd.f32 %v2309, %v2354
          %v2418 = vadd.f32 %v2310, %v2354
          %2419 = vst [vmem:[#allocation8] sm:$0xff] %v2356
          %2420 = vst [vmem:[#allocation8 + $0x8] sm:$0xff] %v2357
          %2421 = vst [vmem:[#allocation8 + $0x10] sm:$0xff] %v2358
          %2422 = vst [vmem:[#allocation8 + $0x18] sm:$0xff] %v2359
          %2423 = vst [vmem:[#allocation8 + $0x20] sm:$0xff] %v2360
          %2424 = vst [vmem:[#allocation8 + $0x28] sm:$0xff] %v2361
          %2425 = vst.msk [vmem:[#allocation8 + $0x30] sm:$0xff] %vm893, %v2362
          %2426 = vst [vmem:[#allocation8 + $0x38] sm:$0xff] %v2363
          %2427 = vst [vmem:[#allocation8 + $0x40] sm:$0xff] %v2364
          %2428 = vst [vmem:[#allocation8 + $0x48] sm:$0xff] %v2365
          %2429 = vst [vmem:[#allocation8 + $0x50] sm:$0xff] %v2366
          %2430 = vst [vmem:[#allocation8 + $0x58] sm:$0xff] %v2367
          %2431 = vst [vmem:[#allocation8 + $0x60] sm:$0xff] %v2368
          %2432 = vst.msk [vmem:[#allocation8 + $0x68] sm:$0xff] %vm893, %v2369
          %2433 = vst [vmem:[#allocation8 + $0x70] sm:$0xff] %v2370
          %2434 = vst [vmem:[#allocation8 + $0x78] sm:$0xff] %v2371
          %2435 = vst [vmem:[#allocation8 + $0x80] sm:$0xff] %v2372
          %2436 = vst [vmem:[#allocation8 + $0x88] sm:$0xff] %v2373
          %2437 = vst [vmem:[#allocation8 + $0x90] sm:$0xff] %v2374
          %2438 = vst [vmem:[#allocation8 + $0x98] sm:$0xff] %v2375
          %2439 = vst.msk [vmem:[#allocation8 + $0xa0] sm:$0xff] %vm893, %v2376
          %2440 = vst [vmem:[#allocation8 + $0xa8] sm:$0xff] %v2377
          %2441 = vst [vmem:[#allocation8 + $0xb0] sm:$0xff] %v2378
          %2442 = vst [vmem:[#allocation8 + $0xb8] sm:$0xff] %v2379
          %2443 = vst [vmem:[#allocation8 + $0xc0] sm:$0xff] %v2380
          %2444 = vst [vmem:[#allocation8 + $0xc8] sm:$0xff] %v2381
          %2445 = vst [vmem:[#allocation8 + $0xd0] sm:$0xff] %v2382
          %2446 = vst.msk [vmem:[#allocation8 + $0xd8] sm:$0xff] %vm893, %v2383
          %2447 = vst [vmem:[#allocation8 + $0xe0] sm:$0xff] %v2384
          %2448 = vst [vmem:[#allocation8 + $0xe8] sm:$0xff] %v2385
          %2449 = vst [vmem:[#allocation8 + $0xf0] sm:$0xff] %v2386
          %2450 = vst [vmem:[#allocation8 + $0xf8] sm:$0xff] %v2387
          %2451 = vst [vmem:[#allocation8 + $0x100] sm:$0xff] %v2388
          %2452 = vst [vmem:[#allocation8 + $0x108] sm:$0xff] %v2389
          %2453 = vst.msk [vmem:[#allocation8 + $0x110] sm:$0xff] %vm893, %v2390
          %2454 = vst [vmem:[#allocation8 + $0x118] sm:$0xff] %v2391
          %2455 = vst [vmem:[#allocation8 + $0x120] sm:$0xff] %v2392
          %2456 = vst [vmem:[#allocation8 + $0x128] sm:$0xff] %v2393
          %2457 = vst [vmem:[#allocation8 + $0x130] sm:$0xff] %v2394
          %2458 = vst [vmem:[#allocation8 + $0x138] sm:$0xff] %v2395
          %2459 = vst [vmem:[#allocation8 + $0x140] sm:$0xff] %v2396
          %2460 = vst.msk [vmem:[#allocation8 + $0x148] sm:$0xff] %vm893, %v2397
          %2461 = vst [vmem:[#allocation8 + $0x150] sm:$0xff] %v2398
          %2462 = vst [vmem:[#allocation8 + $0x158] sm:$0xff] %v2399
          %2463 = vst [vmem:[#allocation8 + $0x160] sm:$0xff] %v2400
          %2464 = vst [vmem:[#allocation8 + $0x168] sm:$0xff] %v2401
          %2465 = vst [vmem:[#allocation8 + $0x170] sm:$0xff] %v2402
          %2466 = vst [vmem:[#allocation8 + $0x178] sm:$0xff] %v2403
          %2467 = vst.msk [vmem:[#allocation8 + $0x180] sm:$0xff] %vm893, %v2404
          %2468 = vst [vmem:[#allocation8 + $0x188] sm:$0xff] %v2405
          %2469 = vst [vmem:[#allocation8 + $0x190] sm:$0xff] %v2406
          %2470 = vst [vmem:[#allocation8 + $0x198] sm:$0xff] %v2407
          %2471 = vst [vmem:[#allocation8 + $0x1a0] sm:$0xff] %v2408
          %2472 = vst [vmem:[#allocation8 + $0x1a8] sm:$0xff] %v2409
          %2473 = vst [vmem:[#allocation8 + $0x1b0] sm:$0xff] %v2410
          %2474 = vst.msk [vmem:[#allocation8 + $0x1b8] sm:$0xff] %vm893, %v2411
          %2475 = vst [vmem:[#allocation8 + $0x1c0] sm:$0xff] %v2412
          %2476 = vst [vmem:[#allocation8 + $0x1c8] sm:$0xff] %v2413
          %2477 = vst [vmem:[#allocation8 + $0x1d0] sm:$0xff] %v2414
          %2478 = vst [vmem:[#allocation8 + $0x1d8] sm:$0xff] %v2415
          %2479 = vst [vmem:[#allocation8 + $0x1e0] sm:$0xff] %v2416
          %2480 = vst [vmem:[#allocation8 + $0x1e8] sm:$0xff] %v2417
          %2481 = vst.msk [vmem:[#allocation8 + $0x1f0] sm:$0xff] %vm893, %v2418
        $region56: #{tpu_custom_call.1} parent=39 // pred_fallthru
          _
        // Predicated region
        $region57: #{tpu_custom_call.1} parent=39 // pred_check
          %p2482 = pneg %p156
        $region58: #{tpu_custom_call.1} parent=39 // pred_check_branch
          %2484 = sbr.rel (%p2482) target = $region60
        $region59: #{tpu_custom_call.1} parent=39 // pred_region
          %2486 = vsyncadd [#allocation5], 0
          %s2487 = sshll.u32 [#allocation8], 4
          %s2488 = int_to_ptr.vmem [resolvable:$true] %s2487
          %s2489 = sshll.u32 %s5, 4
          %s2490 = int_to_ptr.hbm [resolvable:$true] %s2489
          %2495 = dma.vmem_to_hbm [thread:$0]  %s2488, 8064, %s2490, [#allocation5], 896, 896, 56
        $region60: #{tpu_custom_call.1} parent=39 // pred_fallthru
          _
        // Predicated region
        $region61: #{tpu_custom_call.1} parent=39 // pred_check
          %p2496 = pneg %p156
        $region62: #{tpu_custom_call.1} parent=39 // pred_check_branch
          %2498 = sbr.rel (%p2496) target = $region64
        $region63: #{tpu_custom_call.1} parent=39 // pred_region
          %2500 = dma.done [#allocation5], 8064
        $region64: #{tpu_custom_call.1} parent=39 // pred_fallthru
          _
      $region40: #{tpu_custom_call.1} parent=5 // pred_fallthru
        _
      %p2501 = scmp.le.s32.totalorder 2, %s18
      // Predicated region
      $region65: #{tpu_custom_call.1} parent=5 // pred_check
        %p2502 = pneg %p2501
      $region66: #{tpu_custom_call.1} parent=5 // pred_check_branch
        %2504 = sbr.rel (%p2502) target = $region68
      $region67: #{tpu_custom_call.1} parent=5 // pred_region
        %s2505 = ssub.s32 %s18, 2
      $region68: #{tpu_custom_call.1} parent=5 // pred_fallthru
        _
    $region6: #{tpu_custom_call.1} parent=1 // loop_footer
      %s22 = sadd.s32 1, %s18
    $region7: #{tpu_custom_call.1} parent=1 // loop_footer_branch
      %17 = sbr.rel target = $region3
    $region8: #{tpu_custom_call.1} parent=1 // loop_exit
      _
    %2506 = vsyncpa [#allocation4], 1
    %s2507 = scalar_lea.sflag [#allocation4], 1
    %2508 = vsyncpa %s2507, 1
    %2509 = vsyncpa [#allocation7], 1
    %s2510 = scalar_lea.sflag [#allocation7], 1
    %2511 = vsyncpa %s2510, 1
    %2512 = vsyncpa [#allocation5], 1
    %s2513 = scalar_lea.sflag [#allocation5], 1
    %2514 = vsyncpa %s2513, 1

</llo_original>
